<compile_context>
chip_gen: v5e
topology: v5e:2x2
jax: 0.10.0
libtpu: 0.0.40
codegen_flags: <defaults>
</compile_context>

<pallas_src>
import functools

import jax
import jax.numpy as jnp
from jax.experimental import pallas as pl
from jax.experimental.pallas import tpu as pltpu


def _cbam_kernel(wsa_ref, x_ref, w1_ref, w2_ref, cmask_ref, out_ref, pad_ref, *, H, W):
    HW = H * W
    off = 3 * W + 3                                    # image origin inside padded flat buffer

    xm = x_ref[0].astype(jnp.float32)                  # (C, HW), lane-dense

    # ---- channel attention: sigmoid(fc(avg) + fc(max)), fc = 1x1 -> ReLU -> 1x1 ----
    avg_c = jnp.mean(xm, axis=1, keepdims=True)        # (C, 1) adaptive avg pool
    max_c = jnp.max(xm, axis=1, keepdims=True)         # (C, 1) adaptive max pool
    pooled = jnp.concatenate([avg_c, max_c], axis=1)   # (C, 2): single MLP pass for both
    hid = jnp.maximum(
        jnp.dot(w1_ref[...], pooled, preferred_element_type=jnp.float32), 0.0)   # (Cr, 2)
    z = jnp.dot(w2_ref[...], hid, preferred_element_type=jnp.float32)            # (C, 2)
    ca = jax.nn.sigmoid(z[:, 0:1] + z[:, 1:2])         # (C, 1)
    y = xm * ca                                        # (C, HW) channel attention applied

    # ---- spatial attention: channel-wise pool -> 7x7 conv -> sigmoid, all in VMEM ----
    avg_sp = jnp.mean(y, axis=0, keepdims=True)        # (1, HW)
    max_sp = jnp.max(y, axis=0, keepdims=True)         # (1, HW)
    # Flat buffer = flattened image with 3 zero rows above/below (+3 guard zeros at
    # each end), so a row shift of the conv is just a flat offset of a*W.  Column
    # over/underflow of a shifted window is killed by the precomputed masks.
    pad_ref[...] = jnp.zeros_like(pad_ref)
    pad_ref[0:1, off:off + HW] = avg_sp
    pad_ref[1:2, off:off + HW] = max_sp

    acc = jnp.zeros((1, HW), jnp.float32)
    for b in range(-3, 4):                             # column (lane) offset — mask hoisted
        tmp = jnp.zeros((1, HW), jnp.float32)
        for c in range(2):
            for a in range(-3, 4):                     # row offset — pure flat shift by a*W
                w = wsa_ref[c * 49 + (a + 3) * 7 + (b + 3)]       # scalar from SMEM
                start = off + a * W + b
                tmp = tmp + w * pad_ref[c:c + 1, start:start + HW]
        acc = acc + cmask_ref[b + 3:b + 4, :] * tmp
    sa = jax.nn.sigmoid(acc)                           # (1, HW) spatial attention

    out_ref[0] = (y * sa).astype(out_ref.dtype)        # lane-dense store, broadcast over C


def cbam_forward(x_nchw, w1, w2, wsa):
    B, C, H, W = x_nchw.shape
    Cr = w1.shape[0]
    HW = H * W
    L = (H + 6) * W + 6

    x_flat = x_nchw.reshape(B, C, HW)                  # free reshape — no transpose
    wsa_flat = wsa.reshape(-1).astype(jnp.float32)     # (98,) conv weights -> SMEM scalars

    # column-validity masks for the 7 lane offsets of the 7x7 conv
    col = jnp.arange(HW, dtype=jnp.int32) % W
    offs = jnp.arange(-3, 4, dtype=jnp.int32)[:, None]
    cmask = ((col[None, :] + offs >= 0) & (col[None, :] + offs < W)).astype(jnp.float32)

    itemsize = jnp.dtype(x_nchw.dtype).itemsize
    est = (4 * C * HW * itemsize           # in + out blocks, double-buffered
           + 8 * C * HW * 4                # f32 intermediates (y, out) headroom
           + 8 * L * 4 + 14 * HW * 4       # padded-conv scratch + masks + weights
           + (1 << 20))
    vmem_limit = int(min(max(est, 8 << 20), 64 << 20))

    # TODO(synk): for very large per-batch feature maps (v7x has only 64 MiB VMEM)
    # add an HW-tiled grid axis ("arbitrary", pl.when-init pooling accumulators) and
    # a parallel spatial-tile axis so both v7x TensorCores stay busy when B == 1.
    out_flat = pl.pallas_call(
        functools.partial(_cbam_kernel, H=H, W=W),
        out_shape=jax.ShapeDtypeStruct((B, C, HW), x_nchw.dtype),
        grid=(B,),
        in_specs=[
            pl.BlockSpec(memory_space=pltpu.MemorySpace.SMEM),   # wsa (98,)
            pl.BlockSpec((1, C, HW), lambda b: (b, 0, 0)),       # x
            pl.BlockSpec((Cr, C), lambda b: (0, 0)),             # w1
            pl.BlockSpec((C, Cr), lambda b: (0, 0)),             # w2
            pl.BlockSpec((7, HW), lambda b: (0, 0)),             # column masks
        ],
        out_specs=pl.BlockSpec((1, C, HW), lambda b: (b, 0, 0)),
        scratch_shapes=[pltpu.VMEM((2, L), jnp.float32)],
        compiler_params=pltpu.CompilerParams(
            dimension_semantics=("parallel",),
            vmem_limit_bytes=vmem_limit),
    )(wsa_flat, x_flat, w1, w2, cmask)

    return out_flat.reshape(B, C, H, W)


def cbam_reference(x, w1, w2, wsa):
    # pure-JAX reference of the PyTorch forward (NCHW)
    avg = x.mean(axis=(2, 3))
    mx = x.max(axis=(2, 3))

    def fc(v):
        return jnp.maximum(v @ w1.T, 0.0) @ w2.T

    ca = jax.nn.sigmoid(fc(avg) + fc(mx))[:, :, None, None]
    y = x * ca
    sp = jnp.stack([y.mean(axis=1), y.max(axis=1)], axis=1)            # (B,2,H,W)
    conv = jax.lax.conv_general_dilated(
        sp, wsa[None], window_strides=(1, 1), padding=((3, 3), (3, 3)),
        dimension_numbers=("NCHW", "OIHW", "NCHW"))
    sa = jax.nn.sigmoid(conv)
    return y * sa


if __name__ == "__main__":
    B, C, H, W = 2, 32, 16, 16          # channels must be >= 16 (reduction C//16)
    Cr = C // 16
    key = jax.random.PRNGKey(0)
    kx, k1, k2, k3 = jax.random.split(key, 4)
    x = jax.random.normal(kx, (B, C, H, W), jnp.float32)
    w1 = 0.2 * jax.random.normal(k1, (Cr, C), jnp.float32)    # Conv2d(C, C//16, 1) weight
    w2 = 0.2 * jax.random.normal(k2, (C, Cr), jnp.float32)    # Conv2d(C//16, C, 1) weight
    wsa = 0.2 * jax.random.normal(k3, (2, 7, 7), jnp.float32) # Conv2d(2, 1, 7) weight

    out = jax.block_until_ready(jax.jit(cbam_forward)(x, w1, w2, wsa))

    ref = cbam_reference(x, w1, w2, wsa)
    assert out.shape == (B, C, H, W)
    err = float(jnp.max(jnp.abs(out - ref)))
    assert jnp.allclose(out, ref, atol=2e-5, rtol=2e-5), err
    print("KERNEL_OK")
</pallas_src>

<mosaic_0001>
module attributes {stable_mosaic.version = 11 : i64} {
  func.func @_cbam_kernel(%arg0: i32, %arg1: memref<98xf32, #tpu.memory_space<smem>>, %arg2: memref<1x32x256xf32, #tpu.memory_space<vmem>>, %arg3: memref<2x32xf32, #tpu.memory_space<vmem>>, %arg4: memref<32x2xf32, #tpu.memory_space<vmem>>, %arg5: memref<7x256xf32, #tpu.memory_space<vmem>>, %arg6: memref<1x32x256xf32, #tpu.memory_space<vmem>>, %arg7: memref<2x358xf32, #tpu.memory_space<vmem>>) attributes {dimension_semantics = [#tpu.dimension_semantics<parallel>], iteration_bounds = array<i64: 2>, scalar_prefetch = 0 : i64, scratch_operands = 1 : i64, tpu.core_type = #tpu.core_type<tc>, window_params = [{transform_indices = @transform_0, window_bounds = array<i64: 98>}, {transform_indices = @transform_1, window_bounds = array<i64: 1, 32, 256>}, {pipeline_mode = #tpu.pipeline_mode<synchronous>, transform_indices = @transform_2, window_bounds = array<i64: 2, 32>}, {pipeline_mode = #tpu.pipeline_mode<synchronous>, transform_indices = @transform_3, window_bounds = array<i64: 32, 2>}, {pipeline_mode = #tpu.pipeline_mode<synchronous>, transform_indices = @transform_4, window_bounds = array<i64: 7, 256>}, {transform_indices = @transform_5, window_bounds = array<i64: 1, 32, 256>}]} {
    %c0 = arith.constant 0 : index
    %c0_0 = arith.constant 0 : index
    %c0_1 = arith.constant 0 : index
    %0 = vector.load %arg2[%c0, %c0_0, %c0_1] : memref<1x32x256xf32, #tpu.memory_space<vmem>>, vector<1x32x256xf32>
    %1 = vector.shape_cast %0 : vector<1x32x256xf32> to vector<32x256xf32>
    %cst = arith.constant dense<0.000000e+00> : vector<32xf32>
    %2 = vector.multi_reduction <add>, %1, %cst [1] : vector<32x256xf32> to vector<32xf32>
    %3 = vector.shape_cast %2 : vector<32xf32> to vector<32x1xf32>
    %cst_2 = arith.constant 2.560000e+02 : f32
    %4 = vector.broadcast %cst_2 : f32 to vector<32x1xf32>
    %5 = arith.divf %3, %4 : vector<32x1xf32>
    %cst_3 = arith.constant dense<0xFF800000> : vector<32xf32>
    %6 = vector.multi_reduction <maximumf>, %1, %cst_3 [1] : vector<32x256xf32> to vector<32xf32>
    %7 = vector.shape_cast %6 : vector<32xf32> to vector<32x1xf32>
    %8 = tpu.concatenate %5, %7 in 1 : vector<32x1xf32>, vector<32x1xf32> -> vector<32x2xf32>
    %c0_4 = arith.constant 0 : index
    %c0_5 = arith.constant 0 : index
    %9 = vector.load %arg3[%c0_4, %c0_5] : memref<2x32xf32, #tpu.memory_space<vmem>>, vector<2x32xf32>
    %cst_6 = arith.constant dense<0.000000e+00> : vector<2x2xf32>
    %10 = tpu.matmul %9, %8, %cst_6 {dimension_numbers = #tpu.dot_dimension_numbers<[1], [0], [0], [1], [0, 0, 1, 1], [], []>} : vector<2x32xf32>, vector<32x2xf32>, vector<2x2xf32> -> vector<2x2xf32>
    %cst_7 = arith.constant 0.000000e+00 : f32
    %11 = vector.broadcast %cst_7 : f32 to vector<2x2xf32>
    %12 = arith.maximumf %10, %11 : vector<2x2xf32>
    %c0_8 = arith.constant 0 : index
    %c0_9 = arith.constant 0 : index
    %13 = vector.load %arg4[%c0_8, %c0_9] : memref<32x2xf32, #tpu.memory_space<vmem>>, vector<32x2xf32>
    %cst_10 = arith.constant dense<0.000000e+00> : vector<32x2xf32>
    %14 = tpu.matmul %13, %12, %cst_10 {dimension_numbers = #tpu.dot_dimension_numbers<[1], [0], [0], [1], [0, 0, 1, 1], [], []>} : vector<32x2xf32>, vector<2x2xf32>, vector<32x2xf32> -> vector<32x2xf32>
    %15 = vector.extract_strided_slice %14 {offsets = [0, 0], sizes = [32, 1], strides = [1, 1]} : vector<32x2xf32> to vector<32x1xf32>
    %16 = vector.extract_strided_slice %14 {offsets = [0, 1], sizes = [32, 1], strides = [1, 1]} : vector<32x2xf32> to vector<32x1xf32>
    %17 = arith.addf %15, %16 : vector<32x1xf32>
    %18 = arith.negf %17 : vector<32x1xf32>
    %19 = math.exp %18 : vector<32x1xf32>
    %cst_11 = arith.constant 1.000000e+00 : f32
    %20 = vector.broadcast %cst_11 : f32 to vector<32x1xf32>
    %21 = arith.addf %20, %19 : vector<32x1xf32>
    %22 = arith.divf %20, %21 : vector<32x1xf32>
    %23 = vector.broadcast %22 : vector<32x1xf32> to vector<32x256xf32>
    %24 = arith.mulf %1, %23 : vector<32x256xf32>
    %cst_12 = arith.constant dense<0.000000e+00> : vector<256xf32>
    %25 = vector.multi_reduction <add>, %24, %cst_12 [0] : vector<32x256xf32> to vector<256xf32>
    %26 = vector.shape_cast %25 : vector<256xf32> to vector<1x256xf32>
    %cst_13 = arith.constant 3.200000e+01 : f32
    %27 = vector.broadcast %cst_13 : f32 to vector<1x256xf32>
    %28 = arith.divf %26, %27 : vector<1x256xf32>
    %cst_14 = arith.constant dense<0xFF800000> : vector<256xf32>
    %29 = vector.multi_reduction <maximumf>, %24, %cst_14 [0] : vector<32x256xf32> to vector<256xf32>
    %30 = vector.shape_cast %29 : vector<256xf32> to vector<1x256xf32>
    %cst_15 = arith.constant 0.000000e+00 : f32
    %31 = vector.broadcast %cst_15 : f32 to vector<2x358xf32>
    %c0_16 = arith.constant 0 : index
    %c0_17 = arith.constant 0 : index
    %32 = vector.load %arg7[%c0_16, %c0_17] : memref<2x358xf32, #tpu.memory_space<vmem>>, vector<2x358xf32>
    tpu.vector_store %arg7[%c0_16, %c0_17], %31 {strides = array<i32>} : memref<2x358xf32, #tpu.memory_space<vmem>>, vector<2x358xf32>,
    %c0_18 = arith.constant 0 : index
    %c51 = arith.constant 51 : index
    %33 = vector.load %arg7[%c0_18, %c51] : memref<2x358xf32, #tpu.memory_space<vmem>>, vector<1x256xf32>
    tpu.vector_store %arg7[%c0_18, %c51], %28 {strides = array<i32>} : memref<2x358xf32, #tpu.memory_space<vmem>>, vector<1x256xf32>,
    %c1 = arith.constant 1 : index
    %c51_19 = arith.constant 51 : index
    %34 = vector.load %arg7[%c1, %c51_19] : memref<2x358xf32, #tpu.memory_space<vmem>>, vector<1x256xf32>
    tpu.vector_store %arg7[%c1, %c51_19], %30 {strides = array<i32>} : memref<2x358xf32, #tpu.memory_space<vmem>>, vector<1x256xf32>,
    %cst_20 = arith.constant 0.000000e+00 : f32
    %35 = vector.broadcast %cst_20 : f32 to vector<1x256xf32>
    %cst_21 = arith.constant 0.000000e+00 : f32
    %36 = vector.broadcast %cst_21 : f32 to vector<1x256xf32>
    %c0_22 = arith.constant 0 : index
    %37 = memref.load %arg1[%c0_22] : memref<98xf32, #tpu.memory_space<smem>>
    %c0_23 = arith.constant 0 : index
    %c0_24 = arith.constant 0 : index
    %38 = vector.load %arg7[%c0_23, %c0_24] : memref<2x358xf32, #tpu.memory_space<vmem>>, vector<1x256xf32>
    %39 = vector.broadcast %37 : f32 to vector<1x256xf32>
    %40 = arith.mulf %39, %38 : vector<1x256xf32>
    %41 = arith.addf %36, %40 : vector<1x256xf32>
    %c7 = arith.constant 7 : index
    %42 = memref.load %arg1[%c7] : memref<98xf32, #tpu.memory_space<smem>>
    %c0_25 = arith.constant 0 : index
    %c16 = arith.constant 16 : index
    %43 = vector.load %arg7[%c0_25, %c16] : memref<2x358xf32, #tpu.memory_space<vmem>>, vector<1x256xf32>
    %44 = vector.broadcast %42 : f32 to vector<1x256xf32>
    %45 = arith.mulf %44, %43 : vector<1x256xf32>
    %46 = arith.addf %41, %45 : vector<1x256xf32>
    %c14 = arith.constant 14 : index
    %47 = memref.load %arg1[%c14] : memref<98xf32, #tpu.memory_space<smem>>
    %c0_26 = arith.constant 0 : index
    %c32 = arith.constant 32 : index
    %48 = vector.load %arg7[%c0_26, %c32] : memref<2x358xf32, #tpu.memory_space<vmem>>, vector<1x256xf32>
    %49 = vector.broadcast %47 : f32 to vector<1x256xf32>
    %50 = arith.mulf %49, %48 : vector<1x256xf32>
    %51 = arith.addf %46, %50 : vector<1x256xf32>
    %c21 = arith.constant 21 : index
    %52 = memref.load %arg1[%c21] : memref<98xf32, #tpu.memory_space<smem>>
    %c0_27 = arith.constant 0 : index
    %c48 = arith.constant 48 : index
    %53 = vector.load %arg7[%c0_27, %c48] : memref<2x358xf32, #tpu.memory_space<vmem>>, vector<1x256xf32>
    %54 = vector.broadcast %52 : f32 to vector<1x256xf32>
    %55 = arith.mulf %54, %53 : vector<1x256xf32>
    %56 = arith.addf %51, %55 : vector<1x256xf32>
    %c28 = arith.constant 28 : index
    %57 = memref.load %arg1[%c28] : memref<98xf32, #tpu.memory_space<smem>>
    %c0_28 = arith.constant 0 : index
    %c64 = arith.constant 64 : index
    %58 = vector.load %arg7[%c0_28, %c64] : memref<2x358xf32, #tpu.memory_space<vmem>>, vector<1x256xf32>
    %59 = vector.broadcast %57 : f32 to vector<1x256xf32>
    %60 = arith.mulf %59, %58 : vector<1x256xf32>
    %61 = arith.addf %56, %60 : vector<1x256xf32>
    %c35 = arith.constant 35 : index
    %62 = memref.load %arg1[%c35] : memref<98xf32, #tpu.memory_space<smem>>
    %c0_29 = arith.constant 0 : index
    %c80 = arith.constant 80 : index
    %63 = vector.load %arg7[%c0_29, %c80] : memref<2x358xf32, #tpu.memory_space<vmem>>, vector<1x256xf32>
    %64 = vector.broadcast %62 : f32 to vector<1x256xf32>
    %65 = arith.mulf %64, %63 : vector<1x256xf32>
    %66 = arith.addf %61, %65 : vector<1x256xf32>
    %c42 = arith.constant 42 : index
    %67 = memref.load %arg1[%c42] : memref<98xf32, #tpu.memory_space<smem>>
    %c0_30 = arith.constant 0 : index
    %c96 = arith.constant 96 : index
    %68 = vector.load %arg7[%c0_30, %c96] : memref<2x358xf32, #tpu.memory_space<vmem>>, vector<1x256xf32>
    %69 = vector.broadcast %67 : f32 to vector<1x256xf32>
    %70 = arith.mulf %69, %68 : vector<1x256xf32>
    %71 = arith.addf %66, %70 : vector<1x256xf32>
    %c49 = arith.constant 49 : index
    %72 = memref.load %arg1[%c49] : memref<98xf32, #tpu.memory_space<smem>>
    %c1_31 = arith.constant 1 : index
    %c0_32 = arith.constant 0 : index
    %73 = vector.load %arg7[%c1_31, %c0_32] : memref<2x358xf32, #tpu.memory_space<vmem>>, vector<1x256xf32>
    %74 = vector.broadcast %72 : f32 to vector<1x256xf32>
    %75 = arith.mulf %74, %73 : vector<1x256xf32>
    %76 = arith.addf %71, %75 : vector<1x256xf32>
    %c56 = arith.constant 56 : index
    %77 = memref.load %arg1[%c56] : memref<98xf32, #tpu.memory_space<smem>>
    %c1_33 = arith.constant 1 : index
    %c16_34 = arith.constant 16 : index
    %78 = vector.load %arg7[%c1_33, %c16_34] : memref<2x358xf32, #tpu.memory_space<vmem>>, vector<1x256xf32>
    %79 = vector.broadcast %77 : f32 to vector<1x256xf32>
    %80 = arith.mulf %79, %78 : vector<1x256xf32>
    %81 = arith.addf %76, %80 : vector<1x256xf32>
    %c63 = arith.constant 63 : index
    %82 = memref.load %arg1[%c63] : memref<98xf32, #tpu.memory_space<smem>>
    %c1_35 = arith.constant 1 : index
    %c32_36 = arith.constant 32 : index
    %83 = vector.load %arg7[%c1_35, %c32_36] : memref<2x358xf32, #tpu.memory_space<vmem>>, vector<1x256xf32>
    %84 = vector.broadcast %82 : f32 to vector<1x256xf32>
    %85 = arith.mulf %84, %83 : vector<1x256xf32>
    %86 = arith.addf %81, %85 : vector<1x256xf32>
    %c70 = arith.constant 70 : index
    %87 = memref.load %arg1[%c70] : memref<98xf32, #tpu.memory_space<smem>>
    %c1_37 = arith.constant 1 : index
    %c48_38 = arith.constant 48 : index
    %88 = vector.load %arg7[%c1_37, %c48_38] : memref<2x358xf32, #tpu.memory_space<vmem>>, vector<1x256xf32>
    %89 = vector.broadcast %87 : f32 to vector<1x256xf32>
    %90 = arith.mulf %89, %88 : vector<1x256xf32>
    %91 = arith.addf %86, %90 : vector<1x256xf32>
    %c77 = arith.constant 77 : index
    %92 = memref.load %arg1[%c77] : memref<98xf32, #tpu.memory_space<smem>>
    %c1_39 = arith.constant 1 : index
    %c64_40 = arith.constant 64 : index
    %93 = vector.load %arg7[%c1_39, %c64_40] : memref<2x358xf32, #tpu.memory_space<vmem>>, vector<1x256xf32>
    %94 = vector.broadcast %92 : f32 to vector<1x256xf32>
    %95 = arith.mulf %94, %93 : vector<1x256xf32>
    %96 = arith.addf %91, %95 : vector<1x256xf32>
    %c84 = arith.constant 84 : index
    %97 = memref.load %arg1[%c84] : memref<98xf32, #tpu.memory_space<smem>>
    %c1_41 = arith.constant 1 : index
    %c80_42 = arith.constant 80 : index
    %98 = vector.load %arg7[%c1_41, %c80_42] : memref<2x358xf32, #tpu.memory_space<vmem>>, vector<1x256xf32>
    %99 = vector.broadcast %97 : f32 to vector<1x256xf32>
    %100 = arith.mulf %99, %98 : vector<1x256xf32>
    %101 = arith.addf %96, %100 : vector<1x256xf32>
    %c91 = arith.constant 91 : index
    %102 = memref.load %arg1[%c91] : memref<98xf32, #tpu.memory_space<smem>>
    %c1_43 = arith.constant 1 : index
    %c96_44 = arith.constant 96 : index
    %103 = vector.load %arg7[%c1_43, %c96_44] : memref<2x358xf32, #tpu.memory_space<vmem>>, vector<1x256xf32>
    %104 = vector.broadcast %102 : f32 to vector<1x256xf32>
    %105 = arith.mulf %104, %103 : vector<1x256xf32>
    %106 = arith.addf %101, %105 : vector<1x256xf32>
    %c0_45 = arith.constant 0 : index
    %c0_46 = arith.constant 0 : index
    %107 = vector.load %arg5[%c0_45, %c0_46] : memref<7x256xf32, #tpu.memory_space<vmem>>, vector<1x256xf32>
    %108 = arith.mulf %107, %106 : vector<1x256xf32>
    %109 = arith.addf %35, %108 : vector<1x256xf32>
    %cst_47 = arith.constant 0.000000e+00 : f32
    %110 = vector.broadcast %cst_47 : f32 to vector<1x256xf32>
    %c1_48 = arith.constant 1 : index
    %111 = memref.load %arg1[%c1_48] : memref<98xf32, #tpu.memory_space<smem>>
    %c0_49 = arith.constant 0 : index
    %c1_50 = arith.constant 1 : index
    %112 = vector.load %arg7[%c0_49, %c1_50] : memref<2x358xf32, #tpu.memory_space<vmem>>, vector<1x256xf32>
    %113 = vector.broadcast %111 : f32 to vector<1x256xf32>
    %114 = arith.mulf %113, %112 : vector<1x256xf32>
    %115 = arith.addf %110, %114 : vector<1x256xf32>
    %c8 = arith.constant 8 : index
    %116 = memref.load %arg1[%c8] : memref<98xf32, #tpu.memory_space<smem>>
    %c0_51 = arith.constant 0 : index
    %c17 = arith.constant 17 : index
    %117 = vector.load %arg7[%c0_51, %c17] : memref<2x358xf32, #tpu.memory_space<vmem>>, vector<1x256xf32>
    %118 = vector.broadcast %116 : f32 to vector<1x256xf32>
    %119 = arith.mulf %118, %117 : vector<1x256xf32>
    %120 = arith.addf %115, %119 : vector<1x256xf32>
    %c15 = arith.constant 15 : index
    %121 = memref.load %arg1[%c15] : memref<98xf32, #tpu.memory_space<smem>>
    %c0_52 = arith.constant 0 : index
    %c33 = arith.constant 33 : index
    %122 = vector.load %arg7[%c0_52, %c33] : memref<2x358xf32, #tpu.memory_space<vmem>>, vector<1x256xf32>
    %123 = vector.broadcast %121 : f32 to vector<1x256xf32>
    %124 = arith.mulf %123, %122 : vector<1x256xf32>
    %125 = arith.addf %120, %124 : vector<1x256xf32>
    %c22 = arith.constant 22 : index
    %126 = memref.load %arg1[%c22] : memref<98xf32, #tpu.memory_space<smem>>
    %c0_53 = arith.constant 0 : index
    %c49_54 = arith.constant 49 : index
    %127 = vector.load %arg7[%c0_53, %c49_54] : memref<2x358xf32, #tpu.memory_space<vmem>>, vector<1x256xf32>
    %128 = vector.broadcast %126 : f32 to vector<1x256xf32>
    %129 = arith.mulf %128, %127 : vector<1x256xf32>
    %130 = arith.addf %125, %129 : vector<1x256xf32>
    %c29 = arith.constant 29 : index
    %131 = memref.load %arg1[%c29] : memref<98xf32, #tpu.memory_space<smem>>
    %c0_55 = arith.constant 0 : index
    %c65 = arith.constant 65 : index
    %132 = vector.load %arg7[%c0_55, %c65] : memref<2x358xf32, #tpu.memory_space<vmem>>, vector<1x256xf32>
    %133 = vector.broadcast %131 : f32 to vector<1x256xf32>
    %134 = arith.mulf %133, %132 : vector<1x256xf32>
    %135 = arith.addf %130, %134 : vector<1x256xf32>
    %c36 = arith.constant 36 : index
    %136 = memref.load %arg1[%c36] : memref<98xf32, #tpu.memory_space<smem>>
    %c0_56 = arith.constant 0 : index
    %c81 = arith.constant 81 : index
    %137 = vector.load %arg7[%c0_56, %c81] : memref<2x358xf32, #tpu.memory_space<vmem>>, vector<1x256xf32>
    %138 = vector.broadcast %136 : f32 to vector<1x256xf32>
    %139 = arith.mulf %138, %137 : vector<1x256xf32>
    %140 = arith.addf %135, %139 : vector<1x256xf32>
    %c43 = arith.constant 43 : index
    %141 = memref.load %arg1[%c43] : memref<98xf32, #tpu.memory_space<smem>>
    %c0_57 = arith.constant 0 : index
    %c97 = arith.constant 97 : index
    %142 = vector.load %arg7[%c0_57, %c97] : memref<2x358xf32, #tpu.memory_space<vmem>>, vector<1x256xf32>
    %143 = vector.broadcast %141 : f32 to vector<1x256xf32>
    %144 = arith.mulf %143, %142 : vector<1x256xf32>
    %145 = arith.addf %140, %144 : vector<1x256xf32>
    %c50 = arith.constant 50 : index
    %146 = memref.load %arg1[%c50] : memref<98xf32, #tpu.memory_space<smem>>
    %c1_58 = arith.constant 1 : index
    %c1_59 = arith.constant 1 : index
    %147 = vector.load %arg7[%c1_58, %c1_59] : memref<2x358xf32, #tpu.memory_space<vmem>>, vector<1x256xf32>
    %148 = vector.broadcast %146 : f32 to vector<1x256xf32>
    %149 = arith.mulf %148, %147 : vector<1x256xf32>
    %150 = arith.addf %145, %149 : vector<1x256xf32>
    %c57 = arith.constant 57 : index
    %151 = memref.load %arg1[%c57] : memref<98xf32, #tpu.memory_space<smem>>
    %c1_60 = arith.constant 1 : index
    %c17_61 = arith.constant 17 : index
    %152 = vector.load %arg7[%c1_60, %c17_61] : memref<2x358xf32, #tpu.memory_space<vmem>>, vector<1x256xf32>
    %153 = vector.broadcast %151 : f32 to vector<1x256xf32>
    %154 = arith.mulf %153, %152 : vector<1x256xf32>
    %155 = arith.addf %150, %154 : vector<1x256xf32>
    %c64_62 = arith.constant 64 : index
    %156 = memref.load %arg1[%c64_62] : memref<98xf32, #tpu.memory_space<smem>>
    %c1_63 = arith.constant 1 : index
    %c33_64 = arith.constant 33 : index
    %157 = vector.load %arg7[%c1_63, %c33_64] : memref<2x358xf32, #tpu.memory_space<vmem>>, vector<1x256xf32>
    %158 = vector.broadcast %156 : f32 to vector<1x256xf32>
    %159 = arith.mulf %158, %157 : vector<1x256xf32>
    %160 = arith.addf %155, %159 : vector<1x256xf32>
    %c71 = arith.constant 71 : index
    %161 = memref.load %arg1[%c71] : memref<98xf32, #tpu.memory_space<smem>>
    %c1_65 = arith.constant 1 : index
    %c49_66 = arith.constant 49 : index
    %162 = vector.load %arg7[%c1_65, %c49_66] : memref<2x358xf32, #tpu.memory_space<vmem>>, vector<1x256xf32>
    %163 = vector.broadcast %161 : f32 to vector<1x256xf32>
    %164 = arith.mulf %163, %162 : vector<1x256xf32>
    %165 = arith.addf %160, %164 : vector<1x256xf32>
    %c78 = arith.constant 78 : index
    %166 = memref.load %arg1[%c78] : memref<98xf32, #tpu.memory_space<smem>>
    %c1_67 = arith.constant 1 : index
    %c65_68 = arith.constant 65 : index
    %167 = vector.load %arg7[%c1_67, %c65_68] : memref<2x358xf32, #tpu.memory_space<vmem>>, vector<1x256xf32>
    %168 = vector.broadcast %166 : f32 to vector<1x256xf32>
    %169 = arith.mulf %168, %167 : vector<1x256xf32>
    %170 = arith.addf %165, %169 : vector<1x256xf32>
    %c85 = arith.constant 85 : index
    %171 = memref.load %arg1[%c85] : memref<98xf32, #tpu.memory_space<smem>>
    %c1_69 = arith.constant 1 : index
    %c81_70 = arith.constant 81 : index
    %172 = vector.load %arg7[%c1_69, %c81_70] : memref<2x358xf32, #tpu.memory_space<vmem>>, vector<1x256xf32>
    %173 = vector.broadcast %171 : f32 to vector<1x256xf32>
    %174 = arith.mulf %173, %172 : vector<1x256xf32>
    %175 = arith.addf %170, %174 : vector<1x256xf32>
    %c92 = arith.constant 92 : index
    %176 = memref.load %arg1[%c92] : memref<98xf32, #tpu.memory_space<smem>>
    %c1_71 = arith.constant 1 : index
    %c97_72 = arith.constant 97 : index
    %177 = vector.load %arg7[%c1_71, %c97_72] : memref<2x358xf32, #tpu.memory_space<vmem>>, vector<1x256xf32>
    %178 = vector.broadcast %176 : f32 to vector<1x256xf32>
    %179 = arith.mulf %178, %177 : vector<1x256xf32>
    %180 = arith.addf %175, %179 : vector<1x256xf32>
    %c1_73 = arith.constant 1 : index
    %c0_74 = arith.constant 0 : index
    %181 = vector.load %arg5[%c1_73, %c0_74] : memref<7x256xf32, #tpu.memory_space<vmem>>, vector<1x256xf32>
    %182 = arith.mulf %181, %180 : vector<1x256xf32>
    %183 = arith.addf %109, %182 : vector<1x256xf32>
    %cst_75 = arith.constant 0.000000e+00 : f32
    %184 = vector.broadcast %cst_75 : f32 to vector<1x256xf32>
    %c2 = arith.constant 2 : index
    %185 = memref.load %arg1[%c2] : memref<98xf32, #tpu.memory_space<smem>>
    %c0_76 = arith.constant 0 : index
    %c2_77 = arith.constant 2 : index
    %186 = vector.load %arg7[%c0_76, %c2_77] : memref<2x358xf32, #tpu.memory_space<vmem>>, vector<1x256xf32>
    %187 = vector.broadcast %185 : f32 to vector<1x256xf32>
    %188 = arith.mulf %187, %186 : vector<1x256xf32>
    %189 = arith.addf %184, %188 : vector<1x256xf32>
    %c9 = arith.constant 9 : index
    %190 = memref.load %arg1[%c9] : memref<98xf32, #tpu.memory_space<smem>>
    %c0_78 = arith.constant 0 : index
    %c18 = arith.constant 18 : index
    %191 = vector.load %arg7[%c0_78, %c18] : memref<2x358xf32, #tpu.memory_space<vmem>>, vector<1x256xf32>
    %192 = vector.broadcast %190 : f32 to vector<1x256xf32>
    %193 = arith.mulf %192, %191 : vector<1x256xf32>
    %194 = arith.addf %189, %193 : vector<1x256xf32>
    %c16_79 = arith.constant 16 : index
    %195 = memref.load %arg1[%c16_79] : memref<98xf32, #tpu.memory_space<smem>>
    %c0_80 = arith.constant 0 : index
    %c34 = arith.constant 34 : index
    %196 = vector.load %arg7[%c0_80, %c34] : memref<2x358xf32, #tpu.memory_space<vmem>>, vector<1x256xf32>
    %197 = vector.broadcast %195 : f32 to vector<1x256xf32>
    %198 = arith.mulf %197, %196 : vector<1x256xf32>
    %199 = arith.addf %194, %198 : vector<1x256xf32>
    %c23 = arith.constant 23 : index
    %200 = memref.load %arg1[%c23] : memref<98xf32, #tpu.memory_space<smem>>
    %c0_81 = arith.constant 0 : index
    %c50_82 = arith.constant 50 : index
    %201 = vector.load %arg7[%c0_81, %c50_82] : memref<2x358xf32, #tpu.memory_space<vmem>>, vector<1x256xf32>
    %202 = vector.broadcast %200 : f32 to vector<1x256xf32>
    %203 = arith.mulf %202, %201 : vector<1x256xf32>
    %204 = arith.addf %199, %203 : vector<1x256xf32>
    %c30 = arith.constant 30 : index
    %205 = memref.load %arg1[%c30] : memref<98xf32, #tpu.memory_space<smem>>
    %c0_83 = arith.constant 0 : index
    %c66 = arith.constant 66 : index
    %206 = vector.load %arg7[%c0_83, %c66] : memref<2x358xf32, #tpu.memory_space<vmem>>, vector<1x256xf32>
    %207 = vector.broadcast %205 : f32 to vector<1x256xf32>
    %208 = arith.mulf %207, %206 : vector<1x256xf32>
    %209 = arith.addf %204, %208 : vector<1x256xf32>
    %c37 = arith.constant 37 : index
    %210 = memref.load %arg1[%c37] : memref<98xf32, #tpu.memory_space<smem>>
    %c0_84 = arith.constant 0 : index
    %c82 = arith.constant 82 : index
    %211 = vector.load %arg7[%c0_84, %c82] : memref<2x358xf32, #tpu.memory_space<vmem>>, vector<1x256xf32>
    %212 = vector.broadcast %210 : f32 to vector<1x256xf32>
    %213 = arith.mulf %212, %211 : vector<1x256xf32>
    %214 = arith.addf %209, %213 : vector<1x256xf32>
    %c44 = arith.constant 44 : index
    %215 = memref.load %arg1[%c44] : memref<98xf32, #tpu.memory_space<smem>>
    %c0_85 = arith.constant 0 : index
    %c98 = arith.constant 98 : index
    %216 = vector.load %arg7[%c0_85, %c98] : memref<2x358xf32, #tpu.memory_space<vmem>>, vector<1x256xf32>
    %217 = vector.broadcast %215 : f32 to vector<1x256xf32>
    %218 = arith.mulf %217, %216 : vector<1x256xf32>
    %219 = arith.addf %214, %218 : vector<1x256xf32>
    %c51_86 = arith.constant 51 : index
    %220 = memref.load %arg1[%c51_86] : memref<98xf32, #tpu.memory_space<smem>>
    %c1_87 = arith.constant 1 : index
    %c2_88 = arith.constant 2 : index
    %221 = vector.load %arg7[%c1_87, %c2_88] : memref<2x358xf32, #tpu.memory_space<vmem>>, vector<1x256xf32>
    %222 = vector.broadcast %220 : f32 to vector<1x256xf32>
    %223 = arith.mulf %222, %221 : vector<1x256xf32>
    %224 = arith.addf %219, %223 : vector<1x256xf32>
    %c58 = arith.constant 58 : index
    %225 = memref.load %arg1[%c58] : memref<98xf32, #tpu.memory_space<smem>>
    %c1_89 = arith.constant 1 : index
    %c18_90 = arith.constant 18 : index
    %226 = vector.load %arg7[%c1_89, %c18_90] : memref<2x358xf32, #tpu.memory_space<vmem>>, vector<1x256xf32>
    %227 = vector.broadcast %225 : f32 to vector<1x256xf32>
    %228 = arith.mulf %227, %226 : vector<1x256xf32>
    %229 = arith.addf %224, %228 : vector<1x256xf32>
    %c65_91 = arith.constant 65 : index
    %230 = memref.load %arg1[%c65_91] : memref<98xf32, #tpu.memory_space<smem>>
    %c1_92 = arith.constant 1 : index
    %c34_93 = arith.constant 34 : index
    %231 = vector.load %arg7[%c1_92, %c34_93] : memref<2x358xf32, #tpu.memory_space<vmem>>, vector<1x256xf32>
    %232 = vector.broadcast %230 : f32 to vector<1x256xf32>
    %233 = arith.mulf %232, %231 : vector<1x256xf32>
    %234 = arith.addf %229, %233 : vector<1x256xf32>
    %c72 = arith.constant 72 : index
    %235 = memref.load %arg1[%c72] : memref<98xf32, #tpu.memory_space<smem>>
    %c1_94 = arith.constant 1 : index
    %c50_95 = arith.constant 50 : index
    %236 = vector.load %arg7[%c1_94, %c50_95] : memref<2x358xf32, #tpu.memory_space<vmem>>, vector<1x256xf32>
    %237 = vector.broadcast %235 : f32 to vector<1x256xf32>
    %238 = arith.mulf %237, %236 : vector<1x256xf32>
    %239 = arith.addf %234, %238 : vector<1x256xf32>
    %c79 = arith.constant 79 : index
    %240 = memref.load %arg1[%c79] : memref<98xf32, #tpu.memory_space<smem>>
    %c1_96 = arith.constant 1 : index
    %c66_97 = arith.constant 66 : index
    %241 = vector.load %arg7[%c1_96, %c66_97] : memref<2x358xf32, #tpu.memory_space<vmem>>, vector<1x256xf32>
    %242 = vector.broadcast %240 : f32 to vector<1x256xf32>
    %243 = arith.mulf %242, %241 : vector<1x256xf32>
    %244 = arith.addf %239, %243 : vector<1x256xf32>
    %c86 = arith.constant 86 : index
    %245 = memref.load %arg1[%c86] : memref<98xf32, #tpu.memory_space<smem>>
    %c1_98 = arith.constant 1 : index
    %c82_99 = arith.constant 82 : index
    %246 = vector.load %arg7[%c1_98, %c82_99] : memref<2x358xf32, #tpu.memory_space<vmem>>, vector<1x256xf32>
    %247 = vector.broadcast %245 : f32 to vector<1x256xf32>
    %248 = arith.mulf %247, %246 : vector<1x256xf32>
    %249 = arith.addf %244, %248 : vector<1x256xf32>
    %c93 = arith.constant 93 : index
    %250 = memref.load %arg1[%c93] : memref<98xf32, #tpu.memory_space<smem>>
    %c1_100 = arith.constant 1 : index
    %c98_101 = arith.constant 98 : index
    %251 = vector.load %arg7[%c1_100, %c98_101] : memref<2x358xf32, #tpu.memory_space<vmem>>, vector<1x256xf32>
    %252 = vector.broadcast %250 : f32 to vector<1x256xf32>
    %253 = arith.mulf %252, %251 : vector<1x256xf32>
    %254 = arith.addf %249, %253 : vector<1x256xf32>
    %c2_102 = arith.constant 2 : index
    %c0_103 = arith.constant 0 : index
    %255 = vector.load %arg5[%c2_102, %c0_103] : memref<7x256xf32, #tpu.memory_space<vmem>>, vector<1x256xf32>
    %256 = arith.mulf %255, %254 : vector<1x256xf32>
    %257 = arith.addf %183, %256 : vector<1x256xf32>
    %cst_104 = arith.constant 0.000000e+00 : f32
    %258 = vector.broadcast %cst_104 : f32 to vector<1x256xf32>
    %c3 = arith.constant 3 : index
    %259 = memref.load %arg1[%c3] : memref<98xf32, #tpu.memory_space<smem>>
    %c0_105 = arith.constant 0 : index
    %c3_106 = arith.constant 3 : index
    %260 = vector.load %arg7[%c0_105, %c3_106] : memref<2x358xf32, #tpu.memory_space<vmem>>, vector<1x256xf32>
    %261 = vector.broadcast %259 : f32 to vector<1x256xf32>
    %262 = arith.mulf %261, %260 : vector<1x256xf32>
    %263 = arith.addf %258, %262 : vector<1x256xf32>
    %c10 = arith.constant 10 : index
    %264 = memref.load %arg1[%c10] : memref<98xf32, #tpu.memory_space<smem>>
    %c0_107 = arith.constant 0 : index
    %c19 = arith.constant 19 : index
    %265 = vector.load %arg7[%c0_107, %c19] : memref<2x358xf32, #tpu.memory_space<vmem>>, vector<1x256xf32>
    %266 = vector.broadcast %264 : f32 to vector<1x256xf32>
    %267 = arith.mulf %266, %265 : vector<1x256xf32>
    %268 = arith.addf %263, %267 : vector<1x256xf32>
    %c17_108 = arith.constant 17 : index
    %269 = memref.load %arg1[%c17_108] : memref<98xf32, #tpu.memory_space<smem>>
    %c0_109 = arith.constant 0 : index
    %c35_110 = arith.constant 35 : index
    %270 = vector.load %arg7[%c0_109, %c35_110] : memref<2x358xf32, #tpu.memory_space<vmem>>, vector<1x256xf32>
    %271 = vector.broadcast %269 : f32 to vector<1x256xf32>
    %272 = arith.mulf %271, %270 : vector<1x256xf32>
    %273 = arith.addf %268, %272 : vector<1x256xf32>
    %c24 = arith.constant 24 : index
    %274 = memref.load %arg1[%c24] : memref<98xf32, #tpu.memory_space<smem>>
    %c0_111 = arith.constant 0 : index
    %c51_112 = arith.constant 51 : index
    %275 = vector.load %arg7[%c0_111, %c51_112] : memref<2x358xf32, #tpu.memory_space<vmem>>, vector<1x256xf32>
    %276 = vector.broadcast %274 : f32 to vector<1x256xf32>
    %277 = arith.mulf %276, %275 : vector<1x256xf32>
    %278 = arith.addf %273, %277 : vector<1x256xf32>
    %c31 = arith.constant 31 : index
    %279 = memref.load %arg1[%c31] : memref<98xf32, #tpu.memory_space<smem>>
    %c0_113 = arith.constant 0 : index
    %c67 = arith.constant 67 : index
    %280 = vector.load %arg7[%c0_113, %c67] : memref<2x358xf32, #tpu.memory_space<vmem>>, vector<1x256xf32>
    %281 = vector.broadcast %279 : f32 to vector<1x256xf32>
    %282 = arith.mulf %281, %280 : vector<1x256xf32>
    %283 = arith.addf %278, %282 : vector<1x256xf32>
    %c38 = arith.constant 38 : index
    %284 = memref.load %arg1[%c38] : memref<98xf32, #tpu.memory_space<smem>>
    %c0_114 = arith.constant 0 : index
    %c83 = arith.constant 83 : index
    %285 = vector.load %arg7[%c0_114, %c83] : memref<2x358xf32, #tpu.memory_space<vmem>>, vector<1x256xf32>
    %286 = vector.broadcast %284 : f32 to vector<1x256xf32>
    %287 = arith.mulf %286, %285 : vector<1x256xf32>
    %288 = arith.addf %283, %287 : vector<1x256xf32>
    %c45 = arith.constant 45 : index
    %289 = memref.load %arg1[%c45] : memref<98xf32, #tpu.memory_space<smem>>
    %c0_115 = arith.constant 0 : index
    %c99 = arith.constant 99 : index
    %290 = vector.load %arg7[%c0_115, %c99] : memref<2x358xf32, #tpu.memory_space<vmem>>, vector<1x256xf32>
    %291 = vector.broadcast %289 : f32 to vector<1x256xf32>
    %292 = arith.mulf %291, %290 : vector<1x256xf32>
    %293 = arith.addf %288, %292 : vector<1x256xf32>
    %c52 = arith.constant 52 : index
    %294 = memref.load %arg1[%c52] : memref<98xf32, #tpu.memory_space<smem>>
    %c1_116 = arith.constant 1 : index
    %c3_117 = arith.constant 3 : index
    %295 = vector.load %arg7[%c1_116, %c3_117] : memref<2x358xf32, #tpu.memory_space<vmem>>, vector<1x256xf32>
    %296 = vector.broadcast %294 : f32 to vector<1x256xf32>
    %297 = arith.mulf %296, %295 : vector<1x256xf32>
    %298 = arith.addf %293, %297 : vector<1x256xf32>
    %c59 = arith.constant 59 : index
    %299 = memref.load %arg1[%c59] : memref<98xf32, #tpu.memory_space<smem>>
    %c1_118 = arith.constant 1 : index
    %c19_119 = arith.constant 19 : index
    %300 = vector.load %arg7[%c1_118, %c19_119] : memref<2x358xf32, #tpu.memory_space<vmem>>, vector<1x256xf32>
    %301 = vector.broadcast %299 : f32 to vector<1x256xf32>
    %302 = arith.mulf %301, %300 : vector<1x256xf32>
    %303 = arith.addf %298, %302 : vector<1x256xf32>
    %c66_120 = arith.constant 66 : index
    %304 = memref.load %arg1[%c66_120] : memref<98xf32, #tpu.memory_space<smem>>
    %c1_121 = arith.constant 1 : index
    %c35_122 = arith.constant 35 : index
    %305 = vector.load %arg7[%c1_121, %c35_122] : memref<2x358xf32, #tpu.memory_space<vmem>>, vector<1x256xf32>
    %306 = vector.broadcast %304 : f32 to vector<1x256xf32>
    %307 = arith.mulf %306, %305 : vector<1x256xf32>
    %308 = arith.addf %303, %307 : vector<1x256xf32>
    %c73 = arith.constant 73 : index
    %309 = memref.load %arg1[%c73] : memref<98xf32, #tpu.memory_space<smem>>
    %c1_123 = arith.constant 1 : index
    %c51_124 = arith.constant 51 : index
    %310 = vector.load %arg7[%c1_123, %c51_124] : memref<2x358xf32, #tpu.memory_space<vmem>>, vector<1x256xf32>
    %311 = vector.broadcast %309 : f32 to vector<1x256xf32>
    %312 = arith.mulf %311, %310 : vector<1x256xf32>
    %313 = arith.addf %308, %312 : vector<1x256xf32>
    %c80_125 = arith.constant 80 : index
    %314 = memref.load %arg1[%c80_125] : memref<98xf32, #tpu.memory_space<smem>>
    %c1_126 = arith.constant 1 : index
    %c67_127 = arith.constant 67 : index
    %315 = vector.load %arg7[%c1_126, %c67_127] : memref<2x358xf32, #tpu.memory_space<vmem>>, vector<1x256xf32>
    %316 = vector.broadcast %314 : f32 to vector<1x256xf32>
    %317 = arith.mulf %316, %315 : vector<1x256xf32>
    %318 = arith.addf %313, %317 : vector<1x256xf32>
    %c87 = arith.constant 87 : index
    %319 = memref.load %arg1[%c87] : memref<98xf32, #tpu.memory_space<smem>>
    %c1_128 = arith.constant 1 : index
    %c83_129 = arith.constant 83 : index
    %320 = vector.load %arg7[%c1_128, %c83_129] : memref<2x358xf32, #tpu.memory_space<vmem>>, vector<1x256xf32>
    %321 = vector.broadcast %319 : f32 to vector<1x256xf32>
    %322 = arith.mulf %321, %320 : vector<1x256xf32>
    %323 = arith.addf %318, %322 : vector<1x256xf32>
    %c94 = arith.constant 94 : index
    %324 = memref.load %arg1[%c94] : memref<98xf32, #tpu.memory_space<smem>>
    %c1_130 = arith.constant 1 : index
    %c99_131 = arith.constant 99 : index
    %325 = vector.load %arg7[%c1_130, %c99_131] : memref<2x358xf32, #tpu.memory_space<vmem>>, vector<1x256xf32>
    %326 = vector.broadcast %324 : f32 to vector<1x256xf32>
    %327 = arith.mulf %326, %325 : vector<1x256xf32>
    %328 = arith.addf %323, %327 : vector<1x256xf32>
    %c3_132 = arith.constant 3 : index
    %c0_133 = arith.constant 0 : index
    %329 = vector.load %arg5[%c3_132, %c0_133] : memref<7x256xf32, #tpu.memory_space<vmem>>, vector<1x256xf32>
    %330 = arith.mulf %329, %328 : vector<1x256xf32>
    %331 = arith.addf %257, %330 : vector<1x256xf32>
    %cst_134 = arith.constant 0.000000e+00 : f32
    %332 = vector.broadcast %cst_134 : f32 to vector<1x256xf32>
    %c4 = arith.constant 4 : index
    %333 = memref.load %arg1[%c4] : memref<98xf32, #tpu.memory_space<smem>>
    %c0_135 = arith.constant 0 : index
    %c4_136 = arith.constant 4 : index
    %334 = vector.load %arg7[%c0_135, %c4_136] : memref<2x358xf32, #tpu.memory_space<vmem>>, vector<1x256xf32>
    %335 = vector.broadcast %333 : f32 to vector<1x256xf32>
    %336 = arith.mulf %335, %334 : vector<1x256xf32>
    %337 = arith.addf %332, %336 : vector<1x256xf32>
    %c11 = arith.constant 11 : index
    %338 = memref.load %arg1[%c11] : memref<98xf32, #tpu.memory_space<smem>>
    %c0_137 = arith.constant 0 : index
    %c20 = arith.constant 20 : index
    %339 = vector.load %arg7[%c0_137, %c20] : memref<2x358xf32, #tpu.memory_space<vmem>>, vector<1x256xf32>
    %340 = vector.broadcast %338 : f32 to vector<1x256xf32>
    %341 = arith.mulf %340, %339 : vector<1x256xf32>
    %342 = arith.addf %337, %341 : vector<1x256xf32>
    %c18_138 = arith.constant 18 : index
    %343 = memref.load %arg1[%c18_138] : memref<98xf32, #tpu.memory_space<smem>>
    %c0_139 = arith.constant 0 : index
    %c36_140 = arith.constant 36 : index
    %344 = vector.load %arg7[%c0_139, %c36_140] : memref<2x358xf32, #tpu.memory_space<vmem>>, vector<1x256xf32>
    %345 = vector.broadcast %343 : f32 to vector<1x256xf32>
    %346 = arith.mulf %345, %344 : vector<1x256xf32>
    %347 = arith.addf %342, %346 : vector<1x256xf32>
    %c25 = arith.constant 25 : index
    %348 = memref.load %arg1[%c25] : memref<98xf32, #tpu.memory_space<smem>>
    %c0_141 = arith.constant 0 : index
    %c52_142 = arith.constant 52 : index
    %349 = vector.load %arg7[%c0_141, %c52_142] : memref<2x358xf32, #tpu.memory_space<vmem>>, vector<1x256xf32>
    %350 = vector.broadcast %348 : f32 to vector<1x256xf32>
    %351 = arith.mulf %350, %349 : vector<1x256xf32>
    %352 = arith.addf %347, %351 : vector<1x256xf32>
    %c32_143 = arith.constant 32 : index
    %353 = memref.load %arg1[%c32_143] : memref<98xf32, #tpu.memory_space<smem>>
    %c0_144 = arith.constant 0 : index
    %c68 = arith.constant 68 : index
    %354 = vector.load %arg7[%c0_144, %c68] : memref<2x358xf32, #tpu.memory_space<vmem>>, vector<1x256xf32>
    %355 = vector.broadcast %353 : f32 to vector<1x256xf32>
    %356 = arith.mulf %355, %354 : vector<1x256xf32>
    %357 = arith.addf %352, %356 : vector<1x256xf32>
    %c39 = arith.constant 39 : index
    %358 = memref.load %arg1[%c39] : memref<98xf32, #tpu.memory_space<smem>>
    %c0_145 = arith.constant 0 : index
    %c84_146 = arith.constant 84 : index
    %359 = vector.load %arg7[%c0_145, %c84_146] : memref<2x358xf32, #tpu.memory_space<vmem>>, vector<1x256xf32>
    %360 = vector.broadcast %358 : f32 to vector<1x256xf32>
    %361 = arith.mulf %360, %359 : vector<1x256xf32>
    %362 = arith.addf %357, %361 : vector<1x256xf32>
    %c46 = arith.constant 46 : index
    %363 = memref.load %arg1[%c46] : memref<98xf32, #tpu.memory_space<smem>>
    %c0_147 = arith.constant 0 : index
    %c100 = arith.constant 100 : index
    %364 = vector.load %arg7[%c0_147, %c100] : memref<2x358xf32, #tpu.memory_space<vmem>>, vector<1x256xf32>
    %365 = vector.broadcast %363 : f32 to vector<1x256xf32>
    %366 = arith.mulf %365, %364 : vector<1x256xf32>
    %367 = arith.addf %362, %366 : vector<1x256xf32>
    %c53 = arith.constant 53 : index
    %368 = memref.load %arg1[%c53] : memref<98xf32, #tpu.memory_space<smem>>
    %c1_148 = arith.constant 1 : index
    %c4_149 = arith.constant 4 : index
    %369 = vector.load %arg7[%c1_148, %c4_149] : memref<2x358xf32, #tpu.memory_space<vmem>>, vector<1x256xf32>
    %370 = vector.broadcast %368 : f32 to vector<1x256xf32>
    %371 = arith.mulf %370, %369 : vector<1x256xf32>
    %372 = arith.addf %367, %371 : vector<1x256xf32>
    %c60 = arith.constant 60 : index
    %373 = memref.load %arg1[%c60] : memref<98xf32, #tpu.memory_space<smem>>
    %c1_150 = arith.constant 1 : index
    %c20_151 = arith.constant 20 : index
    %374 = vector.load %arg7[%c1_150, %c20_151] : memref<2x358xf32, #tpu.memory_space<vmem>>, vector<1x256xf32>
    %375 = vector.broadcast %373 : f32 to vector<1x256xf32>
    %376 = arith.mulf %375, %374 : vector<1x256xf32>
    %377 = arith.addf %372, %376 : vector<1x256xf32>
    %c67_152 = arith.constant 67 : index
    %378 = memref.load %arg1[%c67_152] : memref<98xf32, #tpu.memory_space<smem>>
    %c1_153 = arith.constant 1 : index
    %c36_154 = arith.constant 36 : index
    %379 = vector.load %arg7[%c1_153, %c36_154] : memref<2x358xf32, #tpu.memory_space<vmem>>, vector<1x256xf32>
    %380 = vector.broadcast %378 : f32 to vector<1x256xf32>
    %381 = arith.mulf %380, %379 : vector<1x256xf32>
    %382 = arith.addf %377, %381 : vector<1x256xf32>
    %c74 = arith.constant 74 : index
    %383 = memref.load %arg1[%c74] : memref<98xf32, #tpu.memory_space<smem>>
    %c1_155 = arith.constant 1 : index
    %c52_156 = arith.constant 52 : index
    %384 = vector.load %arg7[%c1_155, %c52_156] : memref<2x358xf32, #tpu.memory_space<vmem>>, vector<1x256xf32>
    %385 = vector.broadcast %383 : f32 to vector<1x256xf32>
    %386 = arith.mulf %385, %384 : vector<1x256xf32>
    %387 = arith.addf %382, %386 : vector<1x256xf32>
    %c81_157 = arith.constant 81 : index
    %388 = memref.load %arg1[%c81_157] : memref<98xf32, #tpu.memory_space<smem>>
    %c1_158 = arith.constant 1 : index
    %c68_159 = arith.constant 68 : index
    %389 = vector.load %arg7[%c1_158, %c68_159] : memref<2x358xf32, #tpu.memory_space<vmem>>, vector<1x256xf32>
    %390 = vector.broadcast %388 : f32 to vector<1x256xf32>
    %391 = arith.mulf %390, %389 : vector<1x256xf32>
    %392 = arith.addf %387, %391 : vector<1x256xf32>
    %c88 = arith.constant 88 : index
    %393 = memref.load %arg1[%c88] : memref<98xf32, #tpu.memory_space<smem>>
    %c1_160 = arith.constant 1 : index
    %c84_161 = arith.constant 84 : index
    %394 = vector.load %arg7[%c1_160, %c84_161] : memref<2x358xf32, #tpu.memory_space<vmem>>, vector<1x256xf32>
    %395 = vector.broadcast %393 : f32 to vector<1x256xf32>
    %396 = arith.mulf %395, %394 : vector<1x256xf32>
    %397 = arith.addf %392, %396 : vector<1x256xf32>
    %c95 = arith.constant 95 : index
    %398 = memref.load %arg1[%c95] : memref<98xf32, #tpu.memory_space<smem>>
    %c1_162 = arith.constant 1 : index
    %c100_163 = arith.constant 100 : index
    %399 = vector.load %arg7[%c1_162, %c100_163] : memref<2x358xf32, #tpu.memory_space<vmem>>, vector<1x256xf32>
    %400 = vector.broadcast %398 : f32 to vector<1x256xf32>
    %401 = arith.mulf %400, %399 : vector<1x256xf32>
    %402 = arith.addf %397, %401 : vector<1x256xf32>
    %c4_164 = arith.constant 4 : index
    %c0_165 = arith.constant 0 : index
    %403 = vector.load %arg5[%c4_164, %c0_165] : memref<7x256xf32, #tpu.memory_space<vmem>>, vector<1x256xf32>
    %404 = arith.mulf %403, %402 : vector<1x256xf32>
    %405 = arith.addf %331, %404 : vector<1x256xf32>
    %cst_166 = arith.constant 0.000000e+00 : f32
    %406 = vector.broadcast %cst_166 : f32 to vector<1x256xf32>
    %c5 = arith.constant 5 : index
    %407 = memref.load %arg1[%c5] : memref<98xf32, #tpu.memory_space<smem>>
    %c0_167 = arith.constant 0 : index
    %c5_168 = arith.constant 5 : index
    %408 = vector.load %arg7[%c0_167, %c5_168] : memref<2x358xf32, #tpu.memory_space<vmem>>, vector<1x256xf32>
    %409 = vector.broadcast %407 : f32 to vector<1x256xf32>
    %410 = arith.mulf %409, %408 : vector<1x256xf32>
    %411 = arith.addf %406, %410 : vector<1x256xf32>
    %c12 = arith.constant 12 : index
    %412 = memref.load %arg1[%c12] : memref<98xf32, #tpu.memory_space<smem>>
    %c0_169 = arith.constant 0 : index
    %c21_170 = arith.constant 21 : index
    %413 = vector.load %arg7[%c0_169, %c21_170] : memref<2x358xf32, #tpu.memory_space<vmem>>, vector<1x256xf32>
    %414 = vector.broadcast %412 : f32 to vector<1x256xf32>
    %415 = arith.mulf %414, %413 : vector<1x256xf32>
    %416 = arith.addf %411, %415 : vector<1x256xf32>
    %c19_171 = arith.constant 19 : index
    %417 = memref.load %arg1[%c19_171] : memref<98xf32, #tpu.memory_space<smem>>
    %c0_172 = arith.constant 0 : index
    %c37_173 = arith.constant 37 : index
    %418 = vector.load %arg7[%c0_172, %c37_173] : memref<2x358xf32, #tpu.memory_space<vmem>>, vector<1x256xf32>
    %419 = vector.broadcast %417 : f32 to vector<1x256xf32>
    %420 = arith.mulf %419, %418 : vector<1x256xf32>
    %421 = arith.addf %416, %420 : vector<1x256xf32>
    %c26 = arith.constant 26 : index
    %422 = memref.load %arg1[%c26] : memref<98xf32, #tpu.memory_space<smem>>
    %c0_174 = arith.constant 0 : index
    %c53_175 = arith.constant 53 : index
    %423 = vector.load %arg7[%c0_174, %c53_175] : memref<2x358xf32, #tpu.memory_space<vmem>>, vector<1x256xf32>
    %424 = vector.broadcast %422 : f32 to vector<1x256xf32>
    %425 = arith.mulf %424, %423 : vector<1x256xf32>
    %426 = arith.addf %421, %425 : vector<1x256xf32>
    %c33_176 = arith.constant 33 : index
    %427 = memref.load %arg1[%c33_176] : memref<98xf32, #tpu.memory_space<smem>>
    %c0_177 = arith.constant 0 : index
    %c69 = arith.constant 69 : index
    %428 = vector.load %arg7[%c0_177, %c69] : memref<2x358xf32, #tpu.memory_space<vmem>>, vector<1x256xf32>
    %429 = vector.broadcast %427 : f32 to vector<1x256xf32>
    %430 = arith.mulf %429, %428 : vector<1x256xf32>
    %431 = arith.addf %426, %430 : vector<1x256xf32>
    %c40 = arith.constant 40 : index
    %432 = memref.load %arg1[%c40] : memref<98xf32, #tpu.memory_space<smem>>
    %c0_178 = arith.constant 0 : index
    %c85_179 = arith.constant 85 : index
    %433 = vector.load %arg7[%c0_178, %c85_179] : memref<2x358xf32, #tpu.memory_space<vmem>>, vector<1x256xf32>
    %434 = vector.broadcast %432 : f32 to vector<1x256xf32>
    %435 = arith.mulf %434, %433 : vector<1x256xf32>
    %436 = arith.addf %431, %435 : vector<1x256xf32>
    %c47 = arith.constant 47 : index
    %437 = memref.load %arg1[%c47] : memref<98xf32, #tpu.memory_space<smem>>
    %c0_180 = arith.constant 0 : index
    %c101 = arith.constant 101 : index
    %438 = vector.load %arg7[%c0_180, %c101] : memref<2x358xf32, #tpu.memory_space<vmem>>, vector<1x256xf32>
    %439 = vector.broadcast %437 : f32 to vector<1x256xf32>
    %440 = arith.mulf %439, %438 : vector<1x256xf32>
    %441 = arith.addf %436, %440 : vector<1x256xf32>
    %c54 = arith.constant 54 : index
    %442 = memref.load %arg1[%c54] : memref<98xf32, #tpu.memory_space<smem>>
    %c1_181 = arith.constant 1 : index
    %c5_182 = arith.constant 5 : index
    %443 = vector.load %arg7[%c1_181, %c5_182] : memref<2x358xf32, #tpu.memory_space<vmem>>, vector<1x256xf32>
    %444 = vector.broadcast %442 : f32 to vector<1x256xf32>
    %445 = arith.mulf %444, %443 : vector<1x256xf32>
    %446 = arith.addf %441, %445 : vector<1x256xf32>
    %c61 = arith.constant 61 : index
    %447 = memref.load %arg1[%c61] : memref<98xf32, #tpu.memory_space<smem>>
    %c1_183 = arith.constant 1 : index
    %c21_184 = arith.constant 21 : index
    %448 = vector.load %arg7[%c1_183, %c21_184] : memref<2x358xf32, #tpu.memory_space<vmem>>, vector<1x256xf32>
    %449 = vector.broadcast %447 : f32 to vector<1x256xf32>
    %450 = arith.mulf %449, %448 : vector<1x256xf32>
    %451 = arith.addf %446, %450 : vector<1x256xf32>
    %c68_185 = arith.constant 68 : index
    %452 = memref.load %arg1[%c68_185] : memref<98xf32, #tpu.memory_space<smem>>
    %c1_186 = arith.constant 1 : index
    %c37_187 = arith.constant 37 : index
    %453 = vector.load %arg7[%c1_186, %c37_187] : memref<2x358xf32, #tpu.memory_space<vmem>>, vector<1x256xf32>
    %454 = vector.broadcast %452 : f32 to vector<1x256xf32>
    %455 = arith.mulf %454, %453 : vector<1x256xf32>
    %456 = arith.addf %451, %455 : vector<1x256xf32>
    %c75 = arith.constant 75 : index
    %457 = memref.load %arg1[%c75] : memref<98xf32, #tpu.memory_space<smem>>
    %c1_188 = arith.constant 1 : index
    %c53_189 = arith.constant 53 : index
    %458 = vector.load %arg7[%c1_188, %c53_189] : memref<2x358xf32, #tpu.memory_space<vmem>>, vector<1x256xf32>
    %459 = vector.broadcast %457 : f32 to vector<1x256xf32>
    %460 = arith.mulf %459, %458 : vector<1x256xf32>
    %461 = arith.addf %456, %460 : vector<1x256xf32>
    %c82_190 = arith.constant 82 : index
    %462 = memref.load %arg1[%c82_190] : memref<98xf32, #tpu.memory_space<smem>>
    %c1_191 = arith.constant 1 : index
    %c69_192 = arith.constant 69 : index
    %463 = vector.load %arg7[%c1_191, %c69_192] : memref<2x358xf32, #tpu.memory_space<vmem>>, vector<1x256xf32>
    %464 = vector.broadcast %462 : f32 to vector<1x256xf32>
    %465 = arith.mulf %464, %463 : vector<1x256xf32>
    %466 = arith.addf %461, %465 : vector<1x256xf32>
    %c89 = arith.constant 89 : index
    %467 = memref.load %arg1[%c89] : memref<98xf32, #tpu.memory_space<smem>>
    %c1_193 = arith.constant 1 : index
    %c85_194 = arith.constant 85 : index
    %468 = vector.load %arg7[%c1_193, %c85_194] : memref<2x358xf32, #tpu.memory_space<vmem>>, vector<1x256xf32>
    %469 = vector.broadcast %467 : f32 to vector<1x256xf32>
    %470 = arith.mulf %469, %468 : vector<1x256xf32>
    %471 = arith.addf %466, %470 : vector<1x256xf32>
    %c96_195 = arith.constant 96 : index
    %472 = memref.load %arg1[%c96_195] : memref<98xf32, #tpu.memory_space<smem>>
    %c1_196 = arith.constant 1 : index
    %c101_197 = arith.constant 101 : index
    %473 = vector.load %arg7[%c1_196, %c101_197] : memref<2x358xf32, #tpu.memory_space<vmem>>, vector<1x256xf32>
    %474 = vector.broadcast %472 : f32 to vector<1x256xf32>
    %475 = arith.mulf %474, %473 : vector<1x256xf32>
    %476 = arith.addf %471, %475 : vector<1x256xf32>
    %c5_198 = arith.constant 5 : index
    %c0_199 = arith.constant 0 : index
    %477 = vector.load %arg5[%c5_198, %c0_199] : memref<7x256xf32, #tpu.memory_space<vmem>>, vector<1x256xf32>
    %478 = arith.mulf %477, %476 : vector<1x256xf32>
    %479 = arith.addf %405, %478 : vector<1x256xf32>
    %cst_200 = arith.constant 0.000000e+00 : f32
    %480 = vector.broadcast %cst_200 : f32 to vector<1x256xf32>
    %c6 = arith.constant 6 : index
    %481 = memref.load %arg1[%c6] : memref<98xf32, #tpu.memory_space<smem>>
    %c0_201 = arith.constant 0 : index
    %c6_202 = arith.constant 6 : index
    %482 = vector.load %arg7[%c0_201, %c6_202] : memref<2x358xf32, #tpu.memory_space<vmem>>, vector<1x256xf32>
    %483 = vector.broadcast %481 : f32 to vector<1x256xf32>
    %484 = arith.mulf %483, %482 : vector<1x256xf32>
    %485 = arith.addf %480, %484 : vector<1x256xf32>
    %c13 = arith.constant 13 : index
    %486 = memref.load %arg1[%c13] : memref<98xf32, #tpu.memory_space<smem>>
    %c0_203 = arith.constant 0 : index
    %c22_204 = arith.constant 22 : index
    %487 = vector.load %arg7[%c0_203, %c22_204] : memref<2x358xf32, #tpu.memory_space<vmem>>, vector<1x256xf32>
    %488 = vector.broadcast %486 : f32 to vector<1x256xf32>
    %489 = arith.mulf %488, %487 : vector<1x256xf32>
    %490 = arith.addf %485, %489 : vector<1x256xf32>
    %c20_205 = arith.constant 20 : index
    %491 = memref.load %arg1[%c20_205] : memref<98xf32, #tpu.memory_space<smem>>
    %c0_206 = arith.constant 0 : index
    %c38_207 = arith.constant 38 : index
    %492 = vector.load %arg7[%c0_206, %c38_207] : memref<2x358xf32, #tpu.memory_space<vmem>>, vector<1x256xf32>
    %493 = vector.broadcast %491 : f32 to vector<1x256xf32>
    %494 = arith.mulf %493, %492 : vector<1x256xf32>
    %495 = arith.addf %490, %494 : vector<1x256xf32>
    %c27 = arith.constant 27 : index
    %496 = memref.load %arg1[%c27] : memref<98xf32, #tpu.memory_space<smem>>
    %c0_208 = arith.constant 0 : index
    %c54_209 = arith.constant 54 : index
    %497 = vector.load %arg7[%c0_208, %c54_209] : memref<2x358xf32, #tpu.memory_space<vmem>>, vector<1x256xf32>
    %498 = vector.broadcast %496 : f32 to vector<1x256xf32>
    %499 = arith.mulf %498, %497 : vector<1x256xf32>
    %500 = arith.addf %495, %499 : vector<1x256xf32>
    %c34_210 = arith.constant 34 : index
    %501 = memref.load %arg1[%c34_210] : memref<98xf32, #tpu.memory_space<smem>>
    %c0_211 = arith.constant 0 : index
    %c70_212 = arith.constant 70 : index
    %502 = vector.load %arg7[%c0_211, %c70_212] : memref<2x358xf32, #tpu.memory_space<vmem>>, vector<1x256xf32>
    %503 = vector.broadcast %501 : f32 to vector<1x256xf32>
    %504 = arith.mulf %503, %502 : vector<1x256xf32>
    %505 = arith.addf %500, %504 : vector<1x256xf32>
    %c41 = arith.constant 41 : index
    %506 = memref.load %arg1[%c41] : memref<98xf32, #tpu.memory_space<smem>>
    %c0_213 = arith.constant 0 : index
    %c86_214 = arith.constant 86 : index
    %507 = vector.load %arg7[%c0_213, %c86_214] : memref<2x358xf32, #tpu.memory_space<vmem>>, vector<1x256xf32>
    %508 = vector.broadcast %506 : f32 to vector<1x256xf32>
    %509 = arith.mulf %508, %507 : vector<1x256xf32>
    %510 = arith.addf %505, %509 : vector<1x256xf32>
    %c48_215 = arith.constant 48 : index
    %511 = memref.load %arg1[%c48_215] : memref<98xf32, #tpu.memory_space<smem>>
    %c0_216 = arith.constant 0 : index
    %c102 = arith.constant 102 : index
    %512 = vector.load %arg7[%c0_216, %c102] : memref<2x358xf32, #tpu.memory_space<vmem>>, vector<1x256xf32>
    %513 = vector.broadcast %511 : f32 to vector<1x256xf32>
    %514 = arith.mulf %513, %512 : vector<1x256xf32>
    %515 = arith.addf %510, %514 : vector<1x256xf32>
    %c55 = arith.constant 55 : index
    %516 = memref.load %arg1[%c55] : memref<98xf32, #tpu.memory_space<smem>>
    %c1_217 = arith.constant 1 : index
    %c6_218 = arith.constant 6 : index
    %517 = vector.load %arg7[%c1_217, %c6_218] : memref<2x358xf32, #tpu.memory_space<vmem>>, vector<1x256xf32>
    %518 = vector.broadcast %516 : f32 to vector<1x256xf32>
    %519 = arith.mulf %518, %517 : vector<1x256xf32>
    %520 = arith.addf %515, %519 : vector<1x256xf32>
    %c62 = arith.constant 62 : index
    %521 = memref.load %arg1[%c62] : memref<98xf32, #tpu.memory_space<smem>>
    %c1_219 = arith.constant 1 : index
    %c22_220 = arith.constant 22 : index
    %522 = vector.load %arg7[%c1_219, %c22_220] : memref<2x358xf32, #tpu.memory_space<vmem>>, vector<1x256xf32>
    %523 = vector.broadcast %521 : f32 to vector<1x256xf32>
    %524 = arith.mulf %523, %522 : vector<1x256xf32>
    %525 = arith.addf %520, %524 : vector<1x256xf32>
    %c69_221 = arith.constant 69 : index
    %526 = memref.load %arg1[%c69_221] : memref<98xf32, #tpu.memory_space<smem>>
    %c1_222 = arith.constant 1 : index
    %c38_223 = arith.constant 38 : index
    %527 = vector.load %arg7[%c1_222, %c38_223] : memref<2x358xf32, #tpu.memory_space<vmem>>, vector<1x256xf32>
    %528 = vector.broadcast %526 : f32 to vector<1x256xf32>
    %529 = arith.mulf %528, %527 : vector<1x256xf32>
    %530 = arith.addf %525, %529 : vector<1x256xf32>
    %c76 = arith.constant 76 : index
    %531 = memref.load %arg1[%c76] : memref<98xf32, #tpu.memory_space<smem>>
    %c1_224 = arith.constant 1 : index
    %c54_225 = arith.constant 54 : index
    %532 = vector.load %arg7[%c1_224, %c54_225] : memref<2x358xf32, #tpu.memory_space<vmem>>, vector<1x256xf32>
    %533 = vector.broadcast %531 : f32 to vector<1x256xf32>
    %534 = arith.mulf %533, %532 : vector<1x256xf32>
    %535 = arith.addf %530, %534 : vector<1x256xf32>
    %c83_226 = arith.constant 83 : index
    %536 = memref.load %arg1[%c83_226] : memref<98xf32, #tpu.memory_space<smem>>
    %c1_227 = arith.constant 1 : index
    %c70_228 = arith.constant 70 : index
    %537 = vector.load %arg7[%c1_227, %c70_228] : memref<2x358xf32, #tpu.memory_space<vmem>>, vector<1x256xf32>
    %538 = vector.broadcast %536 : f32 to vector<1x256xf32>
    %539 = arith.mulf %538, %537 : vector<1x256xf32>
    %540 = arith.addf %535, %539 : vector<1x256xf32>
    %c90 = arith.constant 90 : index
    %541 = memref.load %arg1[%c90] : memref<98xf32, #tpu.memory_space<smem>>
    %c1_229 = arith.constant 1 : index
    %c86_230 = arith.constant 86 : index
    %542 = vector.load %arg7[%c1_229, %c86_230] : memref<2x358xf32, #tpu.memory_space<vmem>>, vector<1x256xf32>
    %543 = vector.broadcast %541 : f32 to vector<1x256xf32>
    %544 = arith.mulf %543, %542 : vector<1x256xf32>
    %545 = arith.addf %540, %544 : vector<1x256xf32>
    %c97_231 = arith.constant 97 : index
    %546 = memref.load %arg1[%c97_231] : memref<98xf32, #tpu.memory_space<smem>>
    %c1_232 = arith.constant 1 : index
    %c102_233 = arith.constant 102 : index
    %547 = vector.load %arg7[%c1_232, %c102_233] : memref<2x358xf32, #tpu.memory_space<vmem>>, vector<1x256xf32>
    %548 = vector.broadcast %546 : f32 to vector<1x256xf32>
    %549 = arith.mulf %548, %547 : vector<1x256xf32>
    %550 = arith.addf %545, %549 : vector<1x256xf32>
    %c6_234 = arith.constant 6 : index
    %c0_235 = arith.constant 0 : index
    %551 = vector.load %arg5[%c6_234, %c0_235] : memref<7x256xf32, #tpu.memory_space<vmem>>, vector<1x256xf32>
    %552 = arith.mulf %551, %550 : vector<1x256xf32>
    %553 = arith.addf %479, %552 : vector<1x256xf32>
    %554 = arith.negf %553 : vector<1x256xf32>
    %555 = math.exp %554 : vector<1x256xf32>
    %cst_236 = arith.constant 1.000000e+00 : f32
    %556 = vector.broadcast %cst_236 : f32 to vector<1x256xf32>
    %557 = arith.addf %556, %555 : vector<1x256xf32>
    %558 = arith.divf %556, %557 : vector<1x256xf32>
    %559 = vector.broadcast %558 : vector<1x256xf32> to vector<32x256xf32>
    %560 = arith.mulf %24, %559 : vector<32x256xf32>
    %c0_237 = arith.constant 0 : index
    %c0_238 = arith.constant 0 : index
    %c0_239 = arith.constant 0 : index
    %561 = vector.load %arg6[%c0_237, %c0_238, %c0_239] : memref<1x32x256xf32, #tpu.memory_space<vmem>>, vector<1x32x256xf32>
    %562 = vector.shape_cast %561 : vector<1x32x256xf32> to vector<32x256xf32>
    %563 = vector.shape_cast %560 : vector<32x256xf32> to vector<1x32x256xf32>
    tpu.vector_store %arg6[%c0_237, %c0_238, %c0_239], %563 {strides = array<i32>} : memref<1x32x256xf32, #tpu.memory_space<vmem>>, vector<1x32x256xf32>,
    return
  }
  func.func @transform_0(%arg0: i32) -> i32 {
    %c0_i32 = arith.constant 0 : i32
    %c0_i32_0 = arith.constant 0 : i32
    return %c0_i32 : i32
  }
  func.func @transform_1(%arg0: i32) -> (i32, i32, i32) {
    %c0_i32 = arith.constant 0 : i32
    %c0_i32_0 = arith.constant 0 : i32
    %c0_i32_1 = arith.constant 0 : i32
    return %arg0, %c0_i32, %c0_i32_0 : i32, i32, i32
  }
  func.func @transform_2(%arg0: i32) -> (i32, i32) {
    %c0_i32 = arith.constant 0 : i32
    %c0_i32_0 = arith.constant 0 : i32
    %c0_i32_1 = arith.constant 0 : i32
    return %c0_i32, %c0_i32_0 : i32, i32
  }
  func.func @transform_3(%arg0: i32) -> (i32, i32) {
    %c0_i32 = arith.constant 0 : i32
    %c0_i32_0 = arith.constant 0 : i32
    %c0_i32_1 = arith.constant 0 : i32
    return %c0_i32, %c0_i32_0 : i32, i32
  }
  func.func @transform_4(%arg0: i32) -> (i32, i32) {
    %c0_i32 = arith.constant 0 : i32
    %c0_i32_0 = arith.constant 0 : i32
    %c0_i32_1 = arith.constant 0 : i32
    return %c0_i32, %c0_i32_0 : i32, i32
  }
  func.func @transform_5(%arg0: i32) -> (i32, i32, i32) {
    %c0_i32 = arith.constant 0 : i32
    %c0_i32_0 = arith.constant 0 : i32
    %c0_i32_1 = arith.constant 0 : i32
    return %arg0, %c0_i32, %c0_i32_0 : i32, i32, i32
  }
}

</mosaic_0001>

<llo_original>
// kernel: cbam_forward.1
$region0: #{cbam_forward.1}
  #allocation0 [shape = 'u32[]', space=smem, size = 0x4, offset = 0x4, fixed_abs, tag = 'smem constant byte address 0x4 - core index']
  #allocation1 [shape = 'u32[72,128]{1,0:T(1,128)}', space=vmem, size = 0x9000, scoped, tag = 'internal scratch']
  #allocation2 [shape = 'f32[2,358]{1,0:T(2,128)}', space=vmem, size = 0xc00, scoped, tag = 'scratch operand']
  %s0 = inlined_call_operand.vmem [shape: f32[98], index: 0, kind: input, shape index: {}]
  %s1 = inlined_call_operand.vmem [shape: f32[2,32,256], index: 1, kind: input, shape index: {}]
  %s2 = inlined_call_operand.vmem [shape: f32[2,32], index: 2, kind: input, shape index: {}]
  %s3 = inlined_call_operand.vmem [shape: f32[32,2], index: 3, kind: input, shape index: {}]
  %s4 = inlined_call_operand.vmem [shape: f32[7,256], index: 4, kind: input, shape index: {}]
  %s5 = inlined_call_operand.vmem [shape: f32[2,32,256], index: 5, kind: output, shape index: {}]
  %s6 = sld [smem:[#allocation0]]
  $region57: #{cbam_forward.1} parent=0
    _
  %s8 = ssub.s32 1, %s6
  %s9 = scalar_select 0, %s8, %s6
  $region1: #{cbam_forward.1} parent=0
    #allocation3 [shape = 'u8[512]{0}', space=smem, size = 0x200, scoped, tag = 'input window, operand 0, single buffered']
    #allocation4 [shape = 's32[2]{0}', space=sflag, size = 0x8, scoped, tag = 'scoped memory for cbam_forward.1']
    %10 = vsyncpa [#allocation4], 0
    loop: start=0, step=1, limit=4
    $region2: #{cbam_forward.1} parent=1 // loop_pre_header
      _
    $region3: #{cbam_forward.1} parent=1 // loop_header
      %s12 = sphi 0, %s16
      %p13 = scmp.ge.s32.totalorder %s12, 4
      %s20 = sphi 0, %s20
      %s22 = sphi 0, %s20
      %s23 = sphi 0, %s22
      %s37 = sphi 0, %s23
      %s43 = sphi 0, %s45
      %s46 = sphi 0, %s43
      %s47 = sphi 0, %s46
      %s63 = sphi 0, %s47
      %s67 = sphi 0, %s67
      %s69 = sphi 0, %s67
      %s70 = sphi 0, %s69
      %s84 = sphi 0, %s70
      %s88 = sphi 0, %s88
      %s90 = sphi 0, %s88
      %s91 = sphi 0, %s90
      %s105 = sphi 0, %s91
      %s109 = sphi 0, %s109
      %s111 = sphi 0, %s109
      %s112 = sphi 0, %s111
      %s126 = sphi 0, %s112
      %s132 = sphi 0, %s134
      %s135 = sphi 0, %s132
      %s136 = sphi 0, %s135
      %s152 = sphi 0, %s136
    $region4: #{cbam_forward.1} parent=1 // loop_header_branch
      %15 = sbr.rel (%p13) target = $region8
    $region5: #{cbam_forward.1} parent=1 // loop_body
      %s17 = ssub.s32 %s12, 1
      %s18 = ssub.s32 %s12, 2
      %s19 = sadd.s32 %s12, 1
      %s21 = sadd.s32 %s20, 1
      %p24 = scmp.eq.s32.totalorder %s12, 1
      %p25 = scmp.ne.s32.totalorder %s20, %s22
      %p26 = scmp.eq.s32.totalorder %s12, 0
      %p27 = por %p25, %p26
      %p28 = scmp.ne.s32.totalorder %s20, %s22
      %p29 = scmp.eq.s32.totalorder %s17, 1
      %p30 = por %p28, %p29
      %p31 = scmp.ne.s32.totalorder %s22, %s23
      %p32 = scmp.eq.s32.totalorder %s17, 0
      %p33 = por %p31, %p32
      %p34 = scmp.ne.s32.totalorder %s22, %s23
      %p35 = scmp.eq.s32.totalorder %s18, 1
      %p36 = por %p34, %p35
      %p38 = scmp.ne.s32.totalorder %s23, %s37
      %p39 = scmp.eq.s32.totalorder %s18, 0
      %p40 = por %p38, %p39
      %s41 = ssub.s32 %s12, %s19
      %p42 = scmp.eq.s32.totalorder %s41, 0
      %s44 = sadd.s32 %s43, 1
      %s45 = scalar_select %p42, %s43, %s44
      %p48 = pneg %p42
      %p49 = scmp.eq.s32.totalorder %s12, 1
      %p50 = por %p48, %p49
      %p51 = scmp.ne.s32.totalorder %s43, %s46
      %p52 = scmp.eq.s32.totalorder %s12, 0
      %p53 = por %p51, %p52
      %p54 = scmp.ne.s32.totalorder %s43, %s46
      %p55 = scmp.eq.s32.totalorder %s17, 1
      %p56 = por %p54, %p55
      %p57 = scmp.ne.s32.totalorder %s46, %s47
      %p58 = scmp.eq.s32.totalorder %s17, 0
      %p59 = por %p57, %p58
      %p60 = scmp.ne.s32.totalorder %s46, %s47
      %p61 = scmp.eq.s32.totalorder %s18, 1
      %p62 = por %p60, %p61
      %p64 = scmp.ne.s32.totalorder %s47, %s63
      %p65 = scmp.eq.s32.totalorder %s18, 0
      %p66 = por %p64, %p65
      %s68 = sadd.s32 %s67, 1
      %p71 = scmp.eq.s32.totalorder %s12, 1
      %p72 = scmp.ne.s32.totalorder %s67, %s69
      %p73 = scmp.eq.s32.totalorder %s12, 0
      %p74 = por %p72, %p73
      %p75 = scmp.ne.s32.totalorder %s67, %s69
      %p76 = scmp.eq.s32.totalorder %s17, 1
      %p77 = por %p75, %p76
      %p78 = scmp.ne.s32.totalorder %s69, %s70
      %p79 = scmp.eq.s32.totalorder %s17, 0
      %p80 = por %p78, %p79
      %p81 = scmp.ne.s32.totalorder %s69, %s70
      %p82 = scmp.eq.s32.totalorder %s18, 1
      %p83 = por %p81, %p82
      %p85 = scmp.ne.s32.totalorder %s70, %s84
      %p86 = scmp.eq.s32.totalorder %s18, 0
      %p87 = por %p85, %p86
      %s89 = sadd.s32 %s88, 1
      %p92 = scmp.eq.s32.totalorder %s12, 1
      %p93 = scmp.ne.s32.totalorder %s88, %s90
      %p94 = scmp.eq.s32.totalorder %s12, 0
      %p95 = por %p93, %p94
      %p96 = scmp.ne.s32.totalorder %s88, %s90
      %p97 = scmp.eq.s32.totalorder %s17, 1
      %p98 = por %p96, %p97
      %p99 = scmp.ne.s32.totalorder %s90, %s91
      %p100 = scmp.eq.s32.totalorder %s17, 0
      %p101 = por %p99, %p100
      %p102 = scmp.ne.s32.totalorder %s90, %s91
      %p103 = scmp.eq.s32.totalorder %s18, 1
      %p104 = por %p102, %p103
      %p106 = scmp.ne.s32.totalorder %s91, %s105
      %p107 = scmp.eq.s32.totalorder %s18, 0
      %p108 = por %p106, %p107
      %s110 = sadd.s32 %s109, 1
      %p113 = scmp.eq.s32.totalorder %s12, 1
      %p114 = scmp.ne.s32.totalorder %s109, %s111
      %p115 = scmp.eq.s32.totalorder %s12, 0
      %p116 = por %p114, %p115
      %p117 = scmp.ne.s32.totalorder %s109, %s111
      %p118 = scmp.eq.s32.totalorder %s17, 1
      %p119 = por %p117, %p118
      %p120 = scmp.ne.s32.totalorder %s111, %s112
      %p121 = scmp.eq.s32.totalorder %s17, 0
      %p122 = por %p120, %p121
      %p123 = scmp.ne.s32.totalorder %s111, %s112
      %p124 = scmp.eq.s32.totalorder %s18, 1
      %p125 = por %p123, %p124
      %p127 = scmp.ne.s32.totalorder %s112, %s126
      %p128 = scmp.eq.s32.totalorder %s18, 0
      %p129 = por %p127, %p128
      %s130 = ssub.s32 %s12, %s19
      %p131 = scmp.eq.s32.totalorder %s130, 0
      %s133 = sadd.s32 %s132, 1
      %s134 = scalar_select %p131, %s132, %s133
      %p137 = pneg %p131
      %p138 = scmp.eq.s32.totalorder %s12, 1
      %p139 = por %p137, %p138
      %p140 = scmp.ne.s32.totalorder %s132, %s135
      %p141 = scmp.eq.s32.totalorder %s12, 0
      %p142 = por %p140, %p141
      %p143 = scmp.ne.s32.totalorder %s132, %s135
      %p144 = scmp.eq.s32.totalorder %s17, 1
      %p145 = por %p143, %p144
      %p146 = scmp.ne.s32.totalorder %s135, %s136
      %p147 = scmp.eq.s32.totalorder %s17, 0
      %p148 = por %p146, %p147
      %p149 = scmp.ne.s32.totalorder %s135, %s136
      %p150 = scmp.eq.s32.totalorder %s18, 1
      %p151 = por %p149, %p150
      %p153 = scmp.ne.s32.totalorder %s136, %s152
      %p154 = scmp.eq.s32.totalorder %s18, 0
      %p155 = por %p153, %p154
      %p156 = scmp.le.s32.totalorder 1, %s12
      %p157 = scmp.lt.s32.totalorder %s12, 3
      %p158 = pnand %p156, %p157
      %p159 = pneg %p158
      // Predicated region
      $region9: #{cbam_forward.1} parent=5 // pred_check
        _
      $region10: #{cbam_forward.1} parent=5 // pred_check_branch
        %161 = sbr.rel (%p158) target = $region12
      $region11: #{cbam_forward.1} parent=5 // pred_region
        %s162 = ssub.s32 %s12, 1
        // Predicated region
        $region13: #{cbam_forward.1} parent=11 // pred_check
          %p163 = pneg %p33
        $region14: #{cbam_forward.1} parent=11 // pred_check_branch
          %165 = sbr.rel (%p163) target = $region16
        $region15: #{cbam_forward.1} parent=11 // pred_region
          %167 = vsyncadd [#allocation4], 0
          %s169 = sshll.u32 %s0, 4
          %s170 = int_to_ptr.vmem [resolvable:$true] %s169
          %172 = dma.vmem_to_smem %s170, 16, [#allocation3], [#allocation4]
        $region16: #{cbam_forward.1} parent=11 // pred_fallthru
          _
        // Predicated region
        $region17: #{cbam_forward.1} parent=11 // pred_check
          %p173 = pneg %p80
        $region18: #{cbam_forward.1} parent=11 // pred_check_branch
          %175 = sbr.rel (%p173) target = $region20
        $region19: #{cbam_forward.1} parent=11 // pred_region
          _
        $region20: #{cbam_forward.1} parent=11 // pred_fallthru
          _
        // Predicated region
        $region21: #{cbam_forward.1} parent=11 // pred_check
          %p176 = pneg %p101
        $region22: #{cbam_forward.1} parent=11 // pred_check_branch
          %178 = sbr.rel (%p176) target = $region24
        $region23: #{cbam_forward.1} parent=11 // pred_region
          _
        $region24: #{cbam_forward.1} parent=11 // pred_fallthru
          _
        // Predicated region
        $region25: #{cbam_forward.1} parent=11 // pred_check
          %p179 = pneg %p122
        $region26: #{cbam_forward.1} parent=11 // pred_check_branch
          %181 = sbr.rel (%p179) target = $region28
        $region27: #{cbam_forward.1} parent=11 // pred_region
          _
        $region28: #{cbam_forward.1} parent=11 // pred_fallthru
          _
      $region12: #{cbam_forward.1} parent=5 // pred_fallthru
        _
      %p182 = scmp.lt.s32.totalorder %s12, 2
      // Predicated region
      $region29: #{cbam_forward.1} parent=5 // pred_check
        %p183 = pneg %p182
      $region30: #{cbam_forward.1} parent=5 // pred_check_branch
        %185 = sbr.rel (%p183) target = $region32
      $region31: #{cbam_forward.1} parent=5 // pred_region
        // Predicated region
        $region33: #{cbam_forward.1} parent=31 // pred_check
          %p186 = pneg %p53
        $region34: #{cbam_forward.1} parent=31 // pred_check_branch
          %188 = sbr.rel (%p186) target = $region36
        $region35: #{cbam_forward.1} parent=31 // pred_region
          %p189 = scmp.lt.s32.totalorder %s12, 1
          %s190 = scalar_select %p189, %s12, 1
          %s191 = smul.addr %s190, 8
          %s192 = smul.addr %s191, 8
          %s193 = scalar_lea.vmem %s1, %s192
        $region36: #{cbam_forward.1} parent=31 // pred_fallthru
          _
      $region32: #{cbam_forward.1} parent=5 // pred_fallthru
        _
      %p194 = scmp.le.s32.totalorder 1, %s12
      %p195 = scmp.lt.s32.totalorder %s12, 3
      %p196 = pnand %p194, %p195
      %p197 = pneg %p196
      // Predicated region
      $region37: #{cbam_forward.1} parent=5 // pred_check
        _
      $region38: #{cbam_forward.1} parent=5 // pred_check_branch
        %199 = sbr.rel (%p196) target = $region40
      $region39: #{cbam_forward.1} parent=5 // pred_region
        %s200 = ssub.s32 %s12, 1
        // Predicated region
        $region41: #{cbam_forward.1} parent=39 // pred_check
          %p201 = pneg %p33
        $region42: #{cbam_forward.1} parent=39 // pred_check_branch
          %203 = sbr.rel (%p201) target = $region44
        $region43: #{cbam_forward.1} parent=39 // pred_region
          %205 = dma.done [#allocation4], 16
        $region44: #{cbam_forward.1} parent=39 // pred_fallthru
          _
        %206 = sfence
        %p207 = pneg %p33
        %p208 = pneg %p30
        %p209 = scmp.lt.s32.totalorder %s17, 1
        %s210 = scalar_select %p209, %s17, 1
        %s211 = smul.addr %s210, 8
        %s212 = smul.addr %s211, 8
        %s213 = scalar_lea.vmem %s1, %s212
        %p214 = pneg %p59
        %p215 = pneg %p56
        %p216 = pneg %p80
        %p217 = pneg %p77
        %p218 = pneg %p101
        %p219 = pneg %p98
        %p220 = pneg %p122
        %p221 = pneg %p119
        %p222 = pneg %p148
        %p223 = pneg %p145
        %p224 = scmp.lt.s32.totalorder %s17, 1
        %s225 = scalar_select %p224, %s17, 1
        %s226 = smul.addr %s225, 8
        %s227 = smul.addr %s226, 8
        %s228 = scalar_lea.vmem %s5, %s227
        %p229 = scmp.lt.s32.totalorder %s17, 1
        %s230 = scalar_select %p229, %s17, 1
        %s231 = smul.addr %s230, 8
        %s232 = smul.addr %s231, 8
        %s233 = scalar_lea.vmem %s1, %s232
        %p234 = scmp.lt.s32.totalorder %s17, 1
        %s235 = scalar_select %p234, %s17, 1
        %s236 = smul.addr %s235, 8
        %s237 = smul.addr %s236, 8
        %s238 = scalar_lea.vmem %s5, %s237
        %v239 = vld [vmem:[%s233] sm:$0xff]
        %v240 = vld [vmem:[%s233 + $0x8] sm:$0xff]
        %v241 = vld [vmem:[%s233 + $0x10] sm:$0xff]
        %v242 = vld [vmem:[%s233 + $0x18] sm:$0xff]
        %v243 = vld [vmem:[%s233 + $0x20] sm:$0xff]
        %v244 = vld [vmem:[%s233 + $0x28] sm:$0xff]
        %v245 = vld [vmem:[%s233 + $0x30] sm:$0xff]
        %v246 = vld [vmem:[%s233 + $0x38] sm:$0xff]
        %v247 = vadd.f32 %v239, %v240
        %248 = vadd.xlane.f32.xlu0 %v247
        %v249 = vpop.xlane.xlu0 %248
        %v250 = vadd.f32 %v241, %v242
        %251 = vadd.xlane.f32.xlu0 %v250
        %v252 = vpop.xlane.xlu0 %251
        %v253 = vadd.f32 %v243, %v244
        %254 = vadd.xlane.f32.xlu0 %v253
        %v255 = vpop.xlane.xlu0 %254
        %v256 = vadd.f32 %v245, %v246
        %257 = vadd.xlane.f32.xlu0 %v256
        %v258 = vpop.xlane.xlu0 %257
        %v259 = vrcp.pop 256.0
        %v260 = vmul.f32 256.0, %v259
        %v261 = vsub.f32 1.0, %v260
        %v262 = vmul.f32 %v259, %v261
        %v263 = vadd.f32 %v259, %v262
        %vm264 = vweird.f32 %v259
        %v265 = vsel %vm264, %v259, %v263
        %v266 = vmul.f32 %v249, %v265
        %v267 = vmul.f32 %v252, %v265
        %v268 = vmul.f32 %v255, %v265
        %v269 = vmul.f32 %v258, %v265
        %v270 = vmax.f32 %v239, %v240
        %271 = vmax.xlane.f32.xlu0 %v270
        %v272 = vpop.xlane.xlu0 %271
        %v273 = vmax.f32 %v241, %v242
        %274 = vmax.xlane.f32.xlu0 %v273
        %v275 = vpop.xlane.xlu0 %274
        %v276 = vmax.f32 %v243, %v244
        %277 = vmax.xlane.f32.xlu0 %v276
        %v278 = vpop.xlane.xlu0 %277
        %v279 = vmax.f32 %v245, %v246
        %280 = vmax.xlane.f32.xlu0 %v279
        %v281 = vpop.xlane.xlu0 %280
        %vm282 = vcmask 7168
        %v283 = vsel %vm282, %v266, %v272
        %v284 = vsel %vm282, %v267, %v275
        %v285 = vsel %vm282, %v268, %v278
        %v286 = vsel %vm282, %v269, %v281
        %v287 = vld [vmem:[%s2] sm:$0x3]
        %vm288 = vcmask 261120
        %v290 = vsel %vm288, %v287, 0
        %292 = vmatpush.msra.mxu0 0.0
        %293 = vmatpush.msra.mxu0 0.0
        %294 = vmatpush.msra.mxu0 0.0
        %295 = vmatpush.msra.mxu0 0.0
        %296 = vmatpush.msra.mxu0 0.0
        %297 = vmatpush.msra.mxu0 0.0
        %298 = vmatpush.msra.mxu0 0.0
        %299 = vmatpush.msra.mxu0 0.0
        %300 = vmatpush.msra.mxu0 0.0
        %301 = vmatpush.msra.mxu0 0.0
        %302 = vmatpush.msra.mxu0 0.0
        %303 = vmatpush.msra.mxu0 0.0
        %304 = vmatpush.msra.mxu0 %v286
        %305 = vmatpush.msra.mxu0 %v285
        %306 = vmatpush.msra.mxu0 %v284
        %307 = vmatpush.msra.mxu0 %v283
        %308 = vmatmul.f32.gmra.mxu0 %v290
        %v309 = vpop.f32.mrf.mxu0
        %v310 = vadd.f32 0.0, %v309
        %311 = vdwg.mxu0
        %v312 = vmax.f32 %v310, 0.0
        %v313 = vld [vmem:[%s3] sm:$0xff]
        %v314 = vld [vmem:[%s3 + $0x8] sm:$0xff]
        %v315 = vld [vmem:[%s3 + $0x10] sm:$0xff]
        %v316 = vld [vmem:[%s3 + $0x18] sm:$0xff]
        %vm317 = vcmask 15360
        %v319 = vsel %vm317, %v313, 0
        %v322 = vsel %vm317, %v314, 0
        %v325 = vsel %vm317, %v315, 0
        %v328 = vsel %vm317, %v316, 0
        %vm330 = vcmask 1041408
        %v332 = vsel %vm330, %v312, 0
        %334 = vmatpush.msra.mxu0 0.0
        %335 = vmatpush.msra.mxu0 0.0
        %336 = vmatpush.msra.mxu0 0.0
        %337 = vmatpush.msra.mxu0 0.0
        %338 = vmatpush.msra.mxu0 0.0
        %339 = vmatpush.msra.mxu0 0.0
        %340 = vmatpush.msra.mxu0 0.0
        %341 = vmatpush.msra.mxu0 0.0
        %342 = vmatpush.msra.mxu0 0.0
        %343 = vmatpush.msra.mxu0 0.0
        %344 = vmatpush.msra.mxu0 0.0
        %345 = vmatpush.msra.mxu0 0.0
        %346 = vmatpush.msra.mxu0 0.0
        %347 = vmatpush.msra.mxu0 0.0
        %348 = vmatpush.msra.mxu0 0.0
        %349 = vmatpush.msra.mxu0 %v332
        %350 = vmatmul.f32.gmra.mxu0 %v319
        %v351 = vpop.f32.mrf.mxu0
        %v352 = vadd.f32 0.0, %v351
        %353 = vmatmul.f32.gmra.mxu0 %v322
        %v354 = vpop.f32.mrf.mxu0
        %v355 = vadd.f32 0.0, %v354
        %356 = vmatmul.f32.gmra.mxu0 %v325
        %v357 = vpop.f32.mrf.mxu0
        %v358 = vadd.f32 0.0, %v357
        %359 = vmatmul.f32.gmra.mxu0 %v328
        %v360 = vpop.f32.mrf.mxu0
        %v361 = vadd.f32 0.0, %v360
        %362 = vdwg.mxu0
        %367 = vrot.lane.b32.xlu0 %v352, 127
        %v368 = vpop.permute.xlu0 %367
        %369 = vrot.lane.b32.xlu0 %v355, 127
        %v370 = vpop.permute.xlu0 %369
        %371 = vrot.lane.b32.xlu0 %v358, 127
        %v372 = vpop.permute.xlu0 %371
        %373 = vrot.lane.b32.xlu0 %v361, 127
        %v374 = vpop.permute.xlu0 %373
        %v379 = vadd.f32 %v352, %v368
        %v380 = vadd.f32 %v355, %v370
        %v381 = vadd.f32 %v358, %v372
        %v382 = vadd.f32 %v361, %v374
        %v383 = vxor.u32 %v379, 2147483648
        %v384 = vxor.u32 %v380, 2147483648
        %v385 = vxor.u32 %v381, 2147483648
        %v386 = vxor.u32 %v382, 2147483648
        %v387 = vmul.f32 %v383, 1.442695
        %v388 = vpow.pop %v387
        %v389 = vmul.f32 %v384, 1.442695
        %v390 = vpow.pop %v389
        %v391 = vmul.f32 %v385, 1.442695
        %v392 = vpow.pop %v391
        %v393 = vmul.f32 %v386, 1.442695
        %v394 = vpow.pop %v393
        %v395 = vadd.f32 %v388, 1.0
        %v396 = vadd.f32 %v390, 1.0
        %v397 = vadd.f32 %v392, 1.0
        %v398 = vadd.f32 %v394, 1.0
        %v399 = vrcp.pop %v395
        %v400 = vmul.f32 %v395, %v399
        %v401 = vsub.f32 1.0, %v400
        %v402 = vmul.f32 %v399, %v401
        %v403 = vadd.f32 %v399, %v402
        %vm404 = vweird.f32 %v395
        %vm405 = vweird.f32 %v399
        %vm406 = vmor %vm404, %vm405
        %v407 = vsel %vm406, %v399, %v403
        %v408 = vand.u32 2147483647, %v395
        %vm409 = vcmp.eq.f32.partialorder %v408, 8.507059e+37
        %v410 = vand.u32 %v395, 2147483648
        %v411 = vor.u32 1.1754944e-38, %v410
        %v412 = vsel %vm409, %v411, %v407
        %v413 = vmul.f32 1.0, %v412
        %v414 = vrcp.pop %v396
        %v415 = vmul.f32 %v396, %v414
        %v416 = vsub.f32 1.0, %v415
        %v417 = vmul.f32 %v414, %v416
        %v418 = vadd.f32 %v414, %v417
        %vm419 = vweird.f32 %v396
        %vm420 = vweird.f32 %v414
        %vm421 = vmor %vm419, %vm420
        %v422 = vsel %vm421, %v414, %v418
        %v423 = vand.u32 2147483647, %v396
        %vm424 = vcmp.eq.f32.partialorder %v423, 8.507059e+37
        %v425 = vand.u32 %v396, 2147483648
        %v426 = vor.u32 1.1754944e-38, %v425
        %v427 = vsel %vm424, %v426, %v422
        %v428 = vmul.f32 1.0, %v427
        %v429 = vrcp.pop %v397
        %v430 = vmul.f32 %v397, %v429
        %v431 = vsub.f32 1.0, %v430
        %v432 = vmul.f32 %v429, %v431
        %v433 = vadd.f32 %v429, %v432
        %vm434 = vweird.f32 %v397
        %vm435 = vweird.f32 %v429
        %vm436 = vmor %vm434, %vm435
        %v437 = vsel %vm436, %v429, %v433
        %v438 = vand.u32 2147483647, %v397
        %vm439 = vcmp.eq.f32.partialorder %v438, 8.507059e+37
        %v440 = vand.u32 %v397, 2147483648
        %v441 = vor.u32 1.1754944e-38, %v440
        %v442 = vsel %vm439, %v441, %v437
        %v443 = vmul.f32 1.0, %v442
        %v444 = vrcp.pop %v398
        %v445 = vmul.f32 %v398, %v444
        %v446 = vsub.f32 1.0, %v445
        %v447 = vmul.f32 %v444, %v446
        %v448 = vadd.f32 %v444, %v447
        %vm449 = vweird.f32 %v398
        %vm450 = vweird.f32 %v444
        %vm451 = vmor %vm449, %vm450
        %v452 = vsel %vm451, %v444, %v448
        %v453 = vand.u32 2147483647, %v398
        %vm454 = vcmp.eq.f32.partialorder %v453, 8.507059e+37
        %v455 = vand.u32 %v398, 2147483648
        %v456 = vor.u32 1.1754944e-38, %v455
        %v457 = vsel %vm454, %v456, %v452
        %v458 = vmul.f32 1.0, %v457
        %460 = vset.pattern.permute.xlu0 0
        %461 = vperm.xlu0 %460, %v413
        %v462 = vpop.permute.xlu0 %461
        %465 = vset.pattern.permute.xlu0 0
        %466 = vperm.xlu0 %465, %v428
        %v467 = vpop.permute.xlu0 %466
        %470 = vset.pattern.permute.xlu0 0
        %471 = vperm.xlu0 %470, %v443
        %v472 = vpop.permute.xlu0 %471
        %475 = vset.pattern.permute.xlu0 0
        %476 = vperm.xlu0 %475, %v458
        %v477 = vpop.permute.xlu0 %476
        %v479 = vmul.f32 %v239, %v462
        %v480 = vmul.f32 %v240, %v462
        %v481 = vmul.f32 %v241, %v467
        %v482 = vmul.f32 %v242, %v467
        %v483 = vmul.f32 %v243, %v472
        %v484 = vmul.f32 %v244, %v472
        %v485 = vmul.f32 %v245, %v477
        %v486 = vmul.f32 %v246, %v477
        %v487 = vadd.f32 %v479, %v481
        %v488 = vadd.f32 %v487, %v483
        %v489 = vadd.f32 %v488, %v485
        %v490 = vrot.slane %v489, 4
        %v491 = vadd.f32 %v489, %v490
        %v492 = vrot.slane %v491, 2
        %v493 = vadd.f32 %v491, %v492
        %v494 = vrot.slane %v493, 1
        %v495 = vadd.f32 %v493, %v494
        %v496 = vadd.f32 %v480, %v482
        %v497 = vadd.f32 %v496, %v484
        %v498 = vadd.f32 %v497, %v486
        %v499 = vrot.slane %v498, 4
        %v500 = vadd.f32 %v498, %v499
        %v501 = vrot.slane %v500, 2
        %v502 = vadd.f32 %v500, %v501
        %v503 = vrot.slane %v502, 1
        %v504 = vadd.f32 %v502, %v503
        %v505 = vrcp.pop 32.0
        %v506 = vmul.f32 32.0, %v505
        %v507 = vsub.f32 1.0, %v506
        %v508 = vmul.f32 %v505, %v507
        %v509 = vadd.f32 %v505, %v508
        %vm510 = vweird.f32 %v505
        %v511 = vsel %vm510, %v505, %v509
        %v512 = vmul.f32 %v495, %v511
        %v513 = vmul.f32 %v504, %v511
        %v514 = vmax.f32 %v479, %v483
        %v515 = vmax.f32 %v481, %v485
        %v516 = vmax.f32 %v514, %v515
        %v517 = vrot.slane %v516, 4
        %v518 = vmax.f32 %v516, %v517
        %v519 = vrot.slane %v518, 2
        %v520 = vmax.f32 %v518, %v519
        %v521 = vrot.slane %v520, 1
        %v522 = vmax.f32 %v520, %v521
        %v523 = vmax.f32 %v480, %v484
        %v524 = vmax.f32 %v482, %v486
        %v525 = vmax.f32 %v523, %v524
        %v526 = vrot.slane %v525, 4
        %v527 = vmax.f32 %v525, %v526
        %v528 = vrot.slane %v527, 2
        %v529 = vmax.f32 %v527, %v528
        %v530 = vrot.slane %v529, 1
        %v531 = vmax.f32 %v529, %v530
        %vm532 = vcmask 1043458
        %vm533 = vmor %vm532, %vm330
        %vm534 = vcmask 832516
        %vm535 = vmor %vm534, %vm533
        %536 = vst.msk [vmem:[#allocation2] sm:$0x3f] %vm535, 0.0
        %v539 = vrot.slane %v513, 7
        %vm540 = vcmask 1040384
        %v541 = vsel %vm540, %v512, %v539
        %542 = vrot.lane.b32.xlu0 %v541, 51
        %v543 = vpop.permute.xlu0 %542
        %v544 = vrot.slane %v543, 7
        %vm545 = vcmask 416768
        %v546 = vsel %vm545, %v544, %v543
        %v548 = vlaneseq
        %vm549 = vcmp.ge.s32.totalorder %v548, 51
        %vm550 = vcmp.lt.s32.totalorder %v548, 307
        %vm551 = vmand %vm549, %vm550
        %552 = vst.msk [vmem:[#allocation2] ss:$2 sm:$0x7] %vm551, %v546
        %v555 = vrot.slane %v531, 7
        %v556 = vsel %vm540, %v522, %v555
        %557 = vrot.lane.b32.xlu0 %v556, 51
        %v558 = vpop.permute.xlu0 %557
        %v559 = vrot.slane %v558, 7
        %v560 = vsel %vm545, %v559, %v558
        %s562 = scalar_lea.vmem [#allocation2], 1
        %563 = vst.msk [vmem:[%s562] ss:$2 sm:$0x7] %vm551, %v560
        %s564 = sld [smem:[#allocation3]]
        %v565 = vld [vmem:[#allocation2] ss:$2 sm:$0x3]
        %v566 = vstv %s564
        %v567 = vmul.f32 %v566, %v565
        %v568 = vadd.f32 %v567, 0.0
        %s569 = sld [smem:[#allocation3 + $0x7]]
        %v570 = vld [vmem:[#allocation2] ss:$2 sm:$0x7]
        %v571 = vstv %s569
        %v572 = vmul.f32 %v571, %v570
        %574 = vrot.lane.b32.xlu0 %v572, 112
        %v575 = vpop.permute.xlu0 %574
        %v576 = vrot.slane %v575, 1
        %vm577 = vcmask 916480
        %v578 = vsel %vm577, %v575, %v576
        %v580 = vadd.f32 %v568, %v578
        %s581 = sld [smem:[#allocation3 + $0xe]]
        %v582 = vstv %s581
        %v583 = vmul.f32 %v582, %v570
        %585 = vrot.lane.b32.xlu0 %v583, 96
        %v586 = vpop.permute.xlu0 %585
        %v587 = vrot.slane %v586, 1
        %vm588 = vcmask 785408
        %v589 = vsel %vm588, %v586, %v587
        %v591 = vadd.f32 %v580, %v589
        %s592 = sld [smem:[#allocation3 + $0x15]]
        %v593 = vstv %s592
        %v594 = vmul.f32 %v593, %v570
        %596 = vrot.lane.b32.xlu0 %v594, 80
        %v597 = vpop.permute.xlu0 %596
        %v598 = vrot.slane %v597, 1
        %vm599 = vcmask 654336
        %v600 = vsel %vm599, %v597, %v598
        %v602 = vadd.f32 %v591, %v600
        %s603 = sld [smem:[#allocation3 + $0x1c]]
        %v604 = vstv %s603
        %v605 = vmul.f32 %v604, %v570
        %607 = vrot.lane.b32.xlu0 %v605, 64
        %v608 = vpop.permute.xlu0 %607
        %v609 = vrot.slane %v608, 1
        %vm610 = vcmask 523264
        %v611 = vsel %vm610, %v608, %v609
        %v613 = vadd.f32 %v602, %v611
        %s614 = sld [smem:[#allocation3 + $0x23]]
        %v615 = vstv %s614
        %v616 = vmul.f32 %v615, %v570
        %618 = vrot.lane.b32.xlu0 %v616, 48
        %v619 = vpop.permute.xlu0 %618
        %v620 = vrot.slane %v619, 1
        %vm621 = vcmask 392192
        %v622 = vsel %vm621, %v619, %v620
        %v624 = vadd.f32 %v613, %v622
        %s625 = sld [smem:[#allocation3 + $0x2a]]
        %v626 = vstv %s625
        %v627 = vmul.f32 %v626, %v570
        %629 = vrot.lane.b32.xlu0 %v627, 32
        %v630 = vpop.permute.xlu0 %629
        %v631 = vrot.slane %v630, 1
        %v632 = vsel %vm288, %v630, %v631
        %v634 = vadd.f32 %v624, %v632
        %s635 = sld [smem:[#allocation3 + $0x31]]
        %v636 = vld [vmem:[%s562] ss:$2 sm:$0x3]
        %v637 = vstv %s635
        %v638 = vmul.f32 %v637, %v636
        %v639 = vadd.f32 %v634, %v638
        %s640 = sld [smem:[#allocation3 + $0x38]]
        %v641 = vld [vmem:[%s562] ss:$2 sm:$0x7]
        %v642 = vstv %s640
        %v643 = vmul.f32 %v642, %v641
        %645 = vrot.lane.b32.xlu0 %v643, 112
        %v646 = vpop.permute.xlu0 %645
        %v647 = vrot.slane %v646, 1
        %v648 = vsel %vm577, %v646, %v647
        %v650 = vadd.f32 %v639, %v648
        %s651 = sld [smem:[#allocation3 + $0x3f]]
        %v652 = vstv %s651
        %v653 = vmul.f32 %v652, %v641
        %655 = vrot.lane.b32.xlu0 %v653, 96
        %v656 = vpop.permute.xlu0 %655
        %v657 = vrot.slane %v656, 1
        %v658 = vsel %vm588, %v656, %v657
        %v660 = vadd.f32 %v650, %v658
        %s661 = sld [smem:[#allocation3 + $0x46]]
        %v662 = vstv %s661
        %v663 = vmul.f32 %v662, %v641
        %665 = vrot.lane.b32.xlu0 %v663, 80
        %v666 = vpop.permute.xlu0 %665
        %v667 = vrot.slane %v666, 1
        %v668 = vsel %vm599, %v666, %v667
        %v670 = vadd.f32 %v660, %v668
        %s671 = sld [smem:[#allocation3 + $0x4d]]
        %v672 = vstv %s671
        %v673 = vmul.f32 %v672, %v641
        %675 = vrot.lane.b32.xlu0 %v673, 64
        %v676 = vpop.permute.xlu0 %675
        %v677 = vrot.slane %v676, 1
        %v678 = vsel %vm610, %v676, %v677
        %v680 = vadd.f32 %v670, %v678
        %s681 = sld [smem:[#allocation3 + $0x54]]
        %v682 = vstv %s681
        %v683 = vmul.f32 %v682, %v641
        %685 = vrot.lane.b32.xlu0 %v683, 48
        %v686 = vpop.permute.xlu0 %685
        %v687 = vrot.slane %v686, 1
        %v688 = vsel %vm621, %v686, %v687
        %v690 = vadd.f32 %v680, %v688
        %s691 = sld [smem:[#allocation3 + $0x5b]]
        %v692 = vstv %s691
        %v693 = vmul.f32 %v692, %v641
        %695 = vrot.lane.b32.xlu0 %v693, 32
        %v696 = vpop.permute.xlu0 %695
        %v697 = vrot.slane %v696, 1
        %v698 = vsel %vm288, %v696, %v697
        %v700 = vadd.f32 %v690, %v698
        %v701 = vld [vmem:[%s4] ss:$8 sm:$0x3]
        %v702 = vmul.f32 %v701, %v700
        %v703 = vadd.f32 %v702, 0.0
        %s704 = sld [smem:[#allocation3 + $0x1]]
        %v705 = vstv %s704
        %v706 = vmul.f32 %v705, %v570
        %v707 = vadd.f32 %v706, 0.0
        %s708 = sld [smem:[#allocation3 + $0x8]]
        %v709 = vstv %s708
        %v710 = vmul.f32 %v709, %v570
        %712 = vrot.lane.b32.xlu0 %v710, 112
        %v713 = vpop.permute.xlu0 %712
        %v714 = vrot.slane %v713, 1
        %v715 = vsel %vm577, %v713, %v714
        %v717 = vadd.f32 %v707, %v715
        %s718 = sld [smem:[#allocation3 + $0xf]]
        %v719 = vstv %s718
        %v720 = vmul.f32 %v719, %v570
        %722 = vrot.lane.b32.xlu0 %v720, 96
        %v723 = vpop.permute.xlu0 %722
        %v724 = vrot.slane %v723, 1
        %v725 = vsel %vm588, %v723, %v724
        %v727 = vadd.f32 %v717, %v725
        %s728 = sld [smem:[#allocation3 + $0x16]]
        %v729 = vstv %s728
        %v730 = vmul.f32 %v729, %v570
        %732 = vrot.lane.b32.xlu0 %v730, 80
        %v733 = vpop.permute.xlu0 %732
        %v734 = vrot.slane %v733, 1
        %v735 = vsel %vm599, %v733, %v734
        %v737 = vadd.f32 %v727, %v735
        %s738 = sld [smem:[#allocation3 + $0x1d]]
        %v739 = vstv %s738
        %v740 = vmul.f32 %v739, %v570
        %742 = vrot.lane.b32.xlu0 %v740, 64
        %v743 = vpop.permute.xlu0 %742
        %v744 = vrot.slane %v743, 1
        %v745 = vsel %vm610, %v743, %v744
        %v747 = vadd.f32 %v737, %v745
        %s748 = sld [smem:[#allocation3 + $0x24]]
        %v749 = vstv %s748
        %v750 = vmul.f32 %v749, %v570
        %752 = vrot.lane.b32.xlu0 %v750, 48
        %v753 = vpop.permute.xlu0 %752
        %v754 = vrot.slane %v753, 1
        %v755 = vsel %vm621, %v753, %v754
        %v757 = vadd.f32 %v747, %v755
        %s758 = sld [smem:[#allocation3 + $0x2b]]
        %v759 = vstv %s758
        %v760 = vmul.f32 %v759, %v570
        %762 = vrot.lane.b32.xlu0 %v760, 32
        %v763 = vpop.permute.xlu0 %762
        %v764 = vrot.slane %v763, 1
        %v765 = vsel %vm288, %v763, %v764
        %v767 = vadd.f32 %v757, %v765
        %s768 = sld [smem:[#allocation3 + $0x32]]
        %v769 = vstv %s768
        %v770 = vmul.f32 %v769, %v641
        %v771 = vadd.f32 %v767, %v770
        %s772 = sld [smem:[#allocation3 + $0x39]]
        %v773 = vstv %s772
        %v774 = vmul.f32 %v773, %v641
        %776 = vrot.lane.b32.xlu0 %v774, 112
        %v777 = vpop.permute.xlu0 %776
        %v778 = vrot.slane %v777, 1
        %v779 = vsel %vm577, %v777, %v778
        %v781 = vadd.f32 %v771, %v779
        %s782 = sld [smem:[#allocation3 + $0x40]]
        %v783 = vstv %s782
        %v784 = vmul.f32 %v783, %v641
        %786 = vrot.lane.b32.xlu0 %v784, 96
        %v787 = vpop.permute.xlu0 %786
        %v788 = vrot.slane %v787, 1
        %v789 = vsel %vm588, %v787, %v788
        %v791 = vadd.f32 %v781, %v789
        %s792 = sld [smem:[#allocation3 + $0x47]]
        %v793 = vstv %s792
        %v794 = vmul.f32 %v793, %v641
        %796 = vrot.lane.b32.xlu0 %v794, 80
        %v797 = vpop.permute.xlu0 %796
        %v798 = vrot.slane %v797, 1
        %v799 = vsel %vm599, %v797, %v798
        %v801 = vadd.f32 %v791, %v799
        %s802 = sld [smem:[#allocation3 + $0x4e]]
        %v803 = vstv %s802
        %v804 = vmul.f32 %v803, %v641
        %806 = vrot.lane.b32.xlu0 %v804, 64
        %v807 = vpop.permute.xlu0 %806
        %v808 = vrot.slane %v807, 1
        %v809 = vsel %vm610, %v807, %v808
        %v811 = vadd.f32 %v801, %v809
        %s812 = sld [smem:[#allocation3 + $0x55]]
        %v813 = vstv %s812
        %v814 = vmul.f32 %v813, %v641
        %816 = vrot.lane.b32.xlu0 %v814, 48
        %v817 = vpop.permute.xlu0 %816
        %v818 = vrot.slane %v817, 1
        %v819 = vsel %vm621, %v817, %v818
        %v821 = vadd.f32 %v811, %v819
        %s822 = sld [smem:[#allocation3 + $0x5c]]
        %v823 = vstv %s822
        %v824 = vmul.f32 %v823, %v641
        %826 = vrot.lane.b32.xlu0 %v824, 32
        %v827 = vpop.permute.xlu0 %826
        %v828 = vrot.slane %v827, 1
        %v829 = vsel %vm288, %v827, %v828
        %v831 = vadd.f32 %v821, %v829
        %s832 = scalar_lea.vmem %s4, 1
        %v833 = vld [vmem:[%s832] ss:$8 sm:$0x3]
        %835 = vrot.lane.b32.xlu0 %v831, 127
        %v836 = vpop.permute.xlu0 %835
        %v837 = vrot.slane %v836, 1
        %vm838 = vcmask 1039360
        %v839 = vsel %vm838, %v836, %v837
        %v841 = vmul.f32 %v833, %v839
        %v842 = vadd.f32 %v703, %v841
        %s843 = sld [smem:[#allocation3 + $0x2]]
        %v844 = vstv %s843
        %v845 = vmul.f32 %v844, %v570
        %v846 = vadd.f32 %v845, 0.0
        %s847 = sld [smem:[#allocation3 + $0x9]]
        %v848 = vstv %s847
        %v849 = vmul.f32 %v848, %v570
        %851 = vrot.lane.b32.xlu0 %v849, 112
        %v852 = vpop.permute.xlu0 %851
        %v853 = vrot.slane %v852, 1
        %v854 = vsel %vm577, %v852, %v853
        %v856 = vadd.f32 %v846, %v854
        %s857 = sld [smem:[#allocation3 + $0x10]]
        %v858 = vstv %s857
        %v859 = vmul.f32 %v858, %v570
        %861 = vrot.lane.b32.xlu0 %v859, 96
        %v862 = vpop.permute.xlu0 %861
        %v863 = vrot.slane %v862, 1
        %v864 = vsel %vm588, %v862, %v863
        %v866 = vadd.f32 %v856, %v864
        %s867 = sld [smem:[#allocation3 + $0x17]]
        %v868 = vstv %s867
        %v869 = vmul.f32 %v868, %v570
        %871 = vrot.lane.b32.xlu0 %v869, 80
        %v872 = vpop.permute.xlu0 %871
        %v873 = vrot.slane %v872, 1
        %v874 = vsel %vm599, %v872, %v873
        %v876 = vadd.f32 %v866, %v874
        %s877 = sld [smem:[#allocation3 + $0x1e]]
        %v878 = vstv %s877
        %v879 = vmul.f32 %v878, %v570
        %881 = vrot.lane.b32.xlu0 %v879, 64
        %v882 = vpop.permute.xlu0 %881
        %v883 = vrot.slane %v882, 1
        %v884 = vsel %vm610, %v882, %v883
        %v886 = vadd.f32 %v876, %v884
        %s887 = sld [smem:[#allocation3 + $0x25]]
        %v888 = vstv %s887
        %v889 = vmul.f32 %v888, %v570
        %891 = vrot.lane.b32.xlu0 %v889, 48
        %v892 = vpop.permute.xlu0 %891
        %v893 = vrot.slane %v892, 1
        %v894 = vsel %vm621, %v892, %v893
        %v896 = vadd.f32 %v886, %v894
        %s897 = sld [smem:[#allocation3 + $0x2c]]
        %v898 = vstv %s897
        %v899 = vmul.f32 %v898, %v570
        %901 = vrot.lane.b32.xlu0 %v899, 32
        %v902 = vpop.permute.xlu0 %901
        %v903 = vrot.slane %v902, 1
        %v904 = vsel %vm288, %v902, %v903
        %v906 = vadd.f32 %v896, %v904
        %s907 = sld [smem:[#allocation3 + $0x33]]
        %v908 = vstv %s907
        %v909 = vmul.f32 %v908, %v641
        %v910 = vadd.f32 %v906, %v909
        %s911 = sld [smem:[#allocation3 + $0x3a]]
        %v912 = vstv %s911
        %v913 = vmul.f32 %v912, %v641
        %915 = vrot.lane.b32.xlu0 %v913, 112
        %v916 = vpop.permute.xlu0 %915
        %v917 = vrot.slane %v916, 1
        %v918 = vsel %vm577, %v916, %v917
        %v920 = vadd.f32 %v910, %v918
        %s921 = sld [smem:[#allocation3 + $0x41]]
        %v922 = vstv %s921
        %v923 = vmul.f32 %v922, %v641
        %925 = vrot.lane.b32.xlu0 %v923, 96
        %v926 = vpop.permute.xlu0 %925
        %v927 = vrot.slane %v926, 1
        %v928 = vsel %vm588, %v926, %v927
        %v930 = vadd.f32 %v920, %v928
        %s931 = sld [smem:[#allocation3 + $0x48]]
        %v932 = vstv %s931
        %v933 = vmul.f32 %v932, %v641
        %935 = vrot.lane.b32.xlu0 %v933, 80
        %v936 = vpop.permute.xlu0 %935
        %v937 = vrot.slane %v936, 1
        %v938 = vsel %vm599, %v936, %v937
        %v940 = vadd.f32 %v930, %v938
        %s941 = sld [smem:[#allocation3 + $0x4f]]
        %v942 = vstv %s941
        %v943 = vmul.f32 %v942, %v641
        %945 = vrot.lane.b32.xlu0 %v943, 64
        %v946 = vpop.permute.xlu0 %945
        %v947 = vrot.slane %v946, 1
        %v948 = vsel %vm610, %v946, %v947
        %v950 = vadd.f32 %v940, %v948
        %s951 = sld [smem:[#allocation3 + $0x56]]
        %v952 = vstv %s951
        %v953 = vmul.f32 %v952, %v641
        %955 = vrot.lane.b32.xlu0 %v953, 48
        %v956 = vpop.permute.xlu0 %955
        %v957 = vrot.slane %v956, 1
        %v958 = vsel %vm621, %v956, %v957
        %v960 = vadd.f32 %v950, %v958
        %s961 = sld [smem:[#allocation3 + $0x5d]]
        %v962 = vstv %s961
        %v963 = vmul.f32 %v962, %v641
        %965 = vrot.lane.b32.xlu0 %v963, 32
        %v966 = vpop.permute.xlu0 %965
        %v967 = vrot.slane %v966, 1
        %v968 = vsel %vm288, %v966, %v967
        %v970 = vadd.f32 %v960, %v968
        %s971 = scalar_lea.vmem %s4, 2
        %v972 = vld [vmem:[%s971] ss:$8 sm:$0x3]
        %974 = vrot.lane.b32.xlu0 %v970, 126
        %v975 = vpop.permute.xlu0 %974
        %v976 = vrot.slane %v975, 1
        %vm977 = vcmask 1031168
        %v978 = vsel %vm977, %v975, %v976
        %v980 = vmul.f32 %v972, %v978
        %v981 = vadd.f32 %v842, %v980
        %s982 = sld [smem:[#allocation3 + $0x3]]
        %v983 = vstv %s982
        %v984 = vmul.f32 %v983, %v570
        %v985 = vadd.f32 %v984, 0.0
        %s986 = sld [smem:[#allocation3 + $0xa]]
        %v987 = vstv %s986
        %v988 = vmul.f32 %v987, %v570
        %990 = vrot.lane.b32.xlu0 %v988, 112
        %v991 = vpop.permute.xlu0 %990
        %v992 = vrot.slane %v991, 1
        %v993 = vsel %vm577, %v991, %v992
        %v995 = vadd.f32 %v985, %v993
        %s996 = sld [smem:[#allocation3 + $0x11]]
        %v997 = vstv %s996
        %v998 = vmul.f32 %v997, %v570
        %1000 = vrot.lane.b32.xlu0 %v998, 96
        %v1001 = vpop.permute.xlu0 %1000
        %v1002 = vrot.slane %v1001, 1
        %v1003 = vsel %vm588, %v1001, %v1002
        %v1005 = vadd.f32 %v995, %v1003
        %s1006 = sld [smem:[#allocation3 + $0x18]]
        %v1007 = vstv %s1006
        %v1008 = vmul.f32 %v1007, %v570
        %1010 = vrot.lane.b32.xlu0 %v1008, 80
        %v1011 = vpop.permute.xlu0 %1010
        %v1012 = vrot.slane %v1011, 1
        %v1013 = vsel %vm599, %v1011, %v1012
        %v1015 = vadd.f32 %v1005, %v1013
        %s1016 = sld [smem:[#allocation3 + $0x1f]]
        %v1017 = vstv %s1016
        %v1018 = vmul.f32 %v1017, %v570
        %1020 = vrot.lane.b32.xlu0 %v1018, 64
        %v1021 = vpop.permute.xlu0 %1020
        %v1022 = vrot.slane %v1021, 1
        %v1023 = vsel %vm610, %v1021, %v1022
        %v1025 = vadd.f32 %v1015, %v1023
        %s1026 = sld [smem:[#allocation3 + $0x26]]
        %v1027 = vstv %s1026
        %v1028 = vmul.f32 %v1027, %v570
        %1030 = vrot.lane.b32.xlu0 %v1028, 48
        %v1031 = vpop.permute.xlu0 %1030
        %v1032 = vrot.slane %v1031, 1
        %v1033 = vsel %vm621, %v1031, %v1032
        %v1035 = vadd.f32 %v1025, %v1033
        %s1036 = sld [smem:[#allocation3 + $0x2d]]
        %v1037 = vstv %s1036
        %v1038 = vmul.f32 %v1037, %v570
        %1040 = vrot.lane.b32.xlu0 %v1038, 32
        %v1041 = vpop.permute.xlu0 %1040
        %v1042 = vrot.slane %v1041, 1
        %v1043 = vsel %vm288, %v1041, %v1042
        %v1045 = vadd.f32 %v1035, %v1043
        %s1046 = sld [smem:[#allocation3 + $0x34]]
        %v1047 = vstv %s1046
        %v1048 = vmul.f32 %v1047, %v641
        %v1049 = vadd.f32 %v1045, %v1048
        %s1050 = sld [smem:[#allocation3 + $0x3b]]
        %v1051 = vstv %s1050
        %v1052 = vmul.f32 %v1051, %v641
        %1054 = vrot.lane.b32.xlu0 %v1052, 112
        %v1055 = vpop.permute.xlu0 %1054
        %v1056 = vrot.slane %v1055, 1
        %v1057 = vsel %vm577, %v1055, %v1056
        %v1059 = vadd.f32 %v1049, %v1057
        %s1060 = sld [smem:[#allocation3 + $0x42]]
        %v1061 = vstv %s1060
        %v1062 = vmul.f32 %v1061, %v641
        %1064 = vrot.lane.b32.xlu0 %v1062, 96
        %v1065 = vpop.permute.xlu0 %1064
        %v1066 = vrot.slane %v1065, 1
        %v1067 = vsel %vm588, %v1065, %v1066
        %v1069 = vadd.f32 %v1059, %v1067
        %s1070 = sld [smem:[#allocation3 + $0x49]]
        %v1071 = vstv %s1070
        %v1072 = vmul.f32 %v1071, %v641
        %1074 = vrot.lane.b32.xlu0 %v1072, 80
        %v1075 = vpop.permute.xlu0 %1074
        %v1076 = vrot.slane %v1075, 1
        %v1077 = vsel %vm599, %v1075, %v1076
        %v1079 = vadd.f32 %v1069, %v1077
        %s1080 = sld [smem:[#allocation3 + $0x50]]
        %v1081 = vstv %s1080
        %v1082 = vmul.f32 %v1081, %v641
        %1084 = vrot.lane.b32.xlu0 %v1082, 64
        %v1085 = vpop.permute.xlu0 %1084
        %v1086 = vrot.slane %v1085, 1
        %v1087 = vsel %vm610, %v1085, %v1086
        %v1089 = vadd.f32 %v1079, %v1087
        %s1090 = sld [smem:[#allocation3 + $0x57]]
        %v1091 = vstv %s1090
        %v1092 = vmul.f32 %v1091, %v641
        %1094 = vrot.lane.b32.xlu0 %v1092, 48
        %v1095 = vpop.permute.xlu0 %1094
        %v1096 = vrot.slane %v1095, 1
        %v1097 = vsel %vm621, %v1095, %v1096
        %v1099 = vadd.f32 %v1089, %v1097
        %s1100 = sld [smem:[#allocation3 + $0x5e]]
        %v1101 = vstv %s1100
        %v1102 = vmul.f32 %v1101, %v641
        %1104 = vrot.lane.b32.xlu0 %v1102, 32
        %v1105 = vpop.permute.xlu0 %1104
        %v1106 = vrot.slane %v1105, 1
        %v1107 = vsel %vm288, %v1105, %v1106
        %v1109 = vadd.f32 %v1099, %v1107
        %s1110 = scalar_lea.vmem %s4, 3
        %v1111 = vld [vmem:[%s1110] ss:$8 sm:$0x3]
        %1113 = vrot.lane.b32.xlu0 %v1109, 125
        %v1114 = vpop.permute.xlu0 %1113
        %v1115 = vrot.slane %v1114, 1
        %vm1116 = vcmask 1022976
        %v1117 = vsel %vm1116, %v1114, %v1115
        %v1119 = vmul.f32 %v1111, %v1117
        %v1120 = vadd.f32 %v981, %v1119
        %s1121 = sld [smem:[#allocation3 + $0x4]]
        %v1122 = vstv %s1121
        %v1123 = vmul.f32 %v1122, %v570
        %v1124 = vadd.f32 %v1123, 0.0
        %s1125 = sld [smem:[#allocation3 + $0xb]]
        %v1126 = vstv %s1125
        %v1127 = vmul.f32 %v1126, %v570
        %1129 = vrot.lane.b32.xlu0 %v1127, 112
        %v1130 = vpop.permute.xlu0 %1129
        %v1131 = vrot.slane %v1130, 1
        %v1132 = vsel %vm577, %v1130, %v1131
        %v1134 = vadd.f32 %v1124, %v1132
        %s1135 = sld [smem:[#allocation3 + $0x12]]
        %v1136 = vstv %s1135
        %v1137 = vmul.f32 %v1136, %v570
        %1139 = vrot.lane.b32.xlu0 %v1137, 96
        %v1140 = vpop.permute.xlu0 %1139
        %v1141 = vrot.slane %v1140, 1
        %v1142 = vsel %vm588, %v1140, %v1141
        %v1144 = vadd.f32 %v1134, %v1142
        %s1145 = sld [smem:[#allocation3 + $0x19]]
        %v1146 = vstv %s1145
        %v1147 = vmul.f32 %v1146, %v570
        %1149 = vrot.lane.b32.xlu0 %v1147, 80
        %v1150 = vpop.permute.xlu0 %1149
        %v1151 = vrot.slane %v1150, 1
        %v1152 = vsel %vm599, %v1150, %v1151
        %v1154 = vadd.f32 %v1144, %v1152
        %s1155 = sld [smem:[#allocation3 + $0x20]]
        %v1156 = vstv %s1155
        %v1157 = vmul.f32 %v1156, %v570
        %1159 = vrot.lane.b32.xlu0 %v1157, 64
        %v1160 = vpop.permute.xlu0 %1159
        %v1161 = vrot.slane %v1160, 1
        %v1162 = vsel %vm610, %v1160, %v1161
        %v1164 = vadd.f32 %v1154, %v1162
        %s1165 = sld [smem:[#allocation3 + $0x27]]
        %v1166 = vstv %s1165
        %v1167 = vmul.f32 %v1166, %v570
        %1169 = vrot.lane.b32.xlu0 %v1167, 48
        %v1170 = vpop.permute.xlu0 %1169
        %v1171 = vrot.slane %v1170, 1
        %v1172 = vsel %vm621, %v1170, %v1171
        %v1174 = vadd.f32 %v1164, %v1172
        %s1175 = sld [smem:[#allocation3 + $0x2e]]
        %v1176 = vstv %s1175
        %v1177 = vmul.f32 %v1176, %v570
        %1179 = vrot.lane.b32.xlu0 %v1177, 32
        %v1180 = vpop.permute.xlu0 %1179
        %v1181 = vrot.slane %v1180, 1
        %v1182 = vsel %vm288, %v1180, %v1181
        %v1184 = vadd.f32 %v1174, %v1182
        %s1185 = sld [smem:[#allocation3 + $0x35]]
        %v1186 = vstv %s1185
        %v1187 = vmul.f32 %v1186, %v641
        %v1188 = vadd.f32 %v1184, %v1187
        %s1189 = sld [smem:[#allocation3 + $0x3c]]
        %v1190 = vstv %s1189
        %v1191 = vmul.f32 %v1190, %v641
        %1193 = vrot.lane.b32.xlu0 %v1191, 112
        %v1194 = vpop.permute.xlu0 %1193
        %v1195 = vrot.slane %v1194, 1
        %v1196 = vsel %vm577, %v1194, %v1195
        %v1198 = vadd.f32 %v1188, %v1196
        %s1199 = sld [smem:[#allocation3 + $0x43]]
        %v1200 = vstv %s1199
        %v1201 = vmul.f32 %v1200, %v641
        %1203 = vrot.lane.b32.xlu0 %v1201, 96
        %v1204 = vpop.permute.xlu0 %1203
        %v1205 = vrot.slane %v1204, 1
        %v1206 = vsel %vm588, %v1204, %v1205
        %v1208 = vadd.f32 %v1198, %v1206
        %s1209 = sld [smem:[#allocation3 + $0x4a]]
        %v1210 = vstv %s1209
        %v1211 = vmul.f32 %v1210, %v641
        %1213 = vrot.lane.b32.xlu0 %v1211, 80
        %v1214 = vpop.permute.xlu0 %1213
        %v1215 = vrot.slane %v1214, 1
        %v1216 = vsel %vm599, %v1214, %v1215
        %v1218 = vadd.f32 %v1208, %v1216
        %s1219 = sld [smem:[#allocation3 + $0x51]]
        %v1220 = vstv %s1219
        %v1221 = vmul.f32 %v1220, %v641
        %1223 = vrot.lane.b32.xlu0 %v1221, 64
        %v1224 = vpop.permute.xlu0 %1223
        %v1225 = vrot.slane %v1224, 1
        %v1226 = vsel %vm610, %v1224, %v1225
        %v1228 = vadd.f32 %v1218, %v1226
        %s1229 = sld [smem:[#allocation3 + $0x58]]
        %v1230 = vstv %s1229
        %v1231 = vmul.f32 %v1230, %v641
        %1233 = vrot.lane.b32.xlu0 %v1231, 48
        %v1234 = vpop.permute.xlu0 %1233
        %v1235 = vrot.slane %v1234, 1
        %v1236 = vsel %vm621, %v1234, %v1235
        %v1238 = vadd.f32 %v1228, %v1236
        %s1239 = sld [smem:[#allocation3 + $0x5f]]
        %v1240 = vstv %s1239
        %v1241 = vmul.f32 %v1240, %v641
        %1243 = vrot.lane.b32.xlu0 %v1241, 32
        %v1244 = vpop.permute.xlu0 %1243
        %v1245 = vrot.slane %v1244, 1
        %v1246 = vsel %vm288, %v1244, %v1245
        %v1248 = vadd.f32 %v1238, %v1246
        %s1249 = scalar_lea.vmem %s4, 4
        %v1250 = vld [vmem:[%s1249] ss:$8 sm:$0x3]
        %1252 = vrot.lane.b32.xlu0 %v1248, 124
        %v1253 = vpop.permute.xlu0 %1252
        %v1254 = vrot.slane %v1253, 1
        %vm1255 = vcmask 1014784
        %v1256 = vsel %vm1255, %v1253, %v1254
        %v1258 = vmul.f32 %v1250, %v1256
        %v1259 = vadd.f32 %v1120, %v1258
        %s1260 = sld [smem:[#allocation3 + $0x5]]
        %v1261 = vstv %s1260
        %v1262 = vmul.f32 %v1261, %v570
        %v1263 = vadd.f32 %v1262, 0.0
        %s1264 = sld [smem:[#allocation3 + $0xc]]
        %v1265 = vstv %s1264
        %v1266 = vmul.f32 %v1265, %v570
        %1268 = vrot.lane.b32.xlu0 %v1266, 112
        %v1269 = vpop.permute.xlu0 %1268
        %v1270 = vrot.slane %v1269, 1
        %v1271 = vsel %vm577, %v1269, %v1270
        %v1273 = vadd.f32 %v1263, %v1271
        %s1274 = sld [smem:[#allocation3 + $0x13]]
        %v1275 = vstv %s1274
        %v1276 = vmul.f32 %v1275, %v570
        %1278 = vrot.lane.b32.xlu0 %v1276, 96
        %v1279 = vpop.permute.xlu0 %1278
        %v1280 = vrot.slane %v1279, 1
        %v1281 = vsel %vm588, %v1279, %v1280
        %v1283 = vadd.f32 %v1273, %v1281
        %s1284 = sld [smem:[#allocation3 + $0x1a]]
        %v1285 = vstv %s1284
        %v1286 = vmul.f32 %v1285, %v570
        %1288 = vrot.lane.b32.xlu0 %v1286, 80
        %v1289 = vpop.permute.xlu0 %1288
        %v1290 = vrot.slane %v1289, 1
        %v1291 = vsel %vm599, %v1289, %v1290
        %v1293 = vadd.f32 %v1283, %v1291
        %s1294 = sld [smem:[#allocation3 + $0x21]]
        %v1295 = vstv %s1294
        %v1296 = vmul.f32 %v1295, %v570
        %1298 = vrot.lane.b32.xlu0 %v1296, 64
        %v1299 = vpop.permute.xlu0 %1298
        %v1300 = vrot.slane %v1299, 1
        %v1301 = vsel %vm610, %v1299, %v1300
        %v1303 = vadd.f32 %v1293, %v1301
        %s1304 = sld [smem:[#allocation3 + $0x28]]
        %v1305 = vstv %s1304
        %v1306 = vmul.f32 %v1305, %v570
        %1308 = vrot.lane.b32.xlu0 %v1306, 48
        %v1309 = vpop.permute.xlu0 %1308
        %v1310 = vrot.slane %v1309, 1
        %v1311 = vsel %vm621, %v1309, %v1310
        %v1313 = vadd.f32 %v1303, %v1311
        %s1314 = sld [smem:[#allocation3 + $0x2f]]
        %v1315 = vstv %s1314
        %v1316 = vmul.f32 %v1315, %v570
        %1318 = vrot.lane.b32.xlu0 %v1316, 32
        %v1319 = vpop.permute.xlu0 %1318
        %v1320 = vrot.slane %v1319, 1
        %v1321 = vsel %vm288, %v1319, %v1320
        %v1323 = vadd.f32 %v1313, %v1321
        %s1324 = sld [smem:[#allocation3 + $0x36]]
        %v1325 = vstv %s1324
        %v1326 = vmul.f32 %v1325, %v641
        %v1327 = vadd.f32 %v1323, %v1326
        %s1328 = sld [smem:[#allocation3 + $0x3d]]
        %v1329 = vstv %s1328
        %v1330 = vmul.f32 %v1329, %v641
        %1332 = vrot.lane.b32.xlu0 %v1330, 112
        %v1333 = vpop.permute.xlu0 %1332
        %v1334 = vrot.slane %v1333, 1
        %v1335 = vsel %vm577, %v1333, %v1334
        %v1337 = vadd.f32 %v1327, %v1335
        %s1338 = sld [smem:[#allocation3 + $0x44]]
        %v1339 = vstv %s1338
        %v1340 = vmul.f32 %v1339, %v641
        %1342 = vrot.lane.b32.xlu0 %v1340, 96
        %v1343 = vpop.permute.xlu0 %1342
        %v1344 = vrot.slane %v1343, 1
        %v1345 = vsel %vm588, %v1343, %v1344
        %v1347 = vadd.f32 %v1337, %v1345
        %s1348 = sld [smem:[#allocation3 + $0x4b]]
        %v1349 = vstv %s1348
        %v1350 = vmul.f32 %v1349, %v641
        %1352 = vrot.lane.b32.xlu0 %v1350, 80
        %v1353 = vpop.permute.xlu0 %1352
        %v1354 = vrot.slane %v1353, 1
        %v1355 = vsel %vm599, %v1353, %v1354
        %v1357 = vadd.f32 %v1347, %v1355
        %s1358 = sld [smem:[#allocation3 + $0x52]]
        %v1359 = vstv %s1358
        %v1360 = vmul.f32 %v1359, %v641
        %1362 = vrot.lane.b32.xlu0 %v1360, 64
        %v1363 = vpop.permute.xlu0 %1362
        %v1364 = vrot.slane %v1363, 1
        %v1365 = vsel %vm610, %v1363, %v1364
        %v1367 = vadd.f32 %v1357, %v1365
        %s1368 = sld [smem:[#allocation3 + $0x59]]
        %v1369 = vstv %s1368
        %v1370 = vmul.f32 %v1369, %v641
        %1372 = vrot.lane.b32.xlu0 %v1370, 48
        %v1373 = vpop.permute.xlu0 %1372
        %v1374 = vrot.slane %v1373, 1
        %v1375 = vsel %vm621, %v1373, %v1374
        %v1377 = vadd.f32 %v1367, %v1375
        %s1378 = sld [smem:[#allocation3 + $0x60]]
        %v1379 = vstv %s1378
        %v1380 = vmul.f32 %v1379, %v641
        %1382 = vrot.lane.b32.xlu0 %v1380, 32
        %v1383 = vpop.permute.xlu0 %1382
        %v1384 = vrot.slane %v1383, 1
        %v1385 = vsel %vm288, %v1383, %v1384
        %v1387 = vadd.f32 %v1377, %v1385
        %s1388 = scalar_lea.vmem %s4, 5
        %v1389 = vld [vmem:[%s1388] ss:$8 sm:$0x3]
        %1391 = vrot.lane.b32.xlu0 %v1387, 123
        %v1392 = vpop.permute.xlu0 %1391
        %v1393 = vrot.slane %v1392, 1
        %vm1394 = vcmask 1006592
        %v1395 = vsel %vm1394, %v1392, %v1393
        %v1397 = vmul.f32 %v1389, %v1395
        %v1398 = vadd.f32 %v1259, %v1397
        %s1399 = sld [smem:[#allocation3 + $0x6]]
        %v1400 = vstv %s1399
        %v1401 = vmul.f32 %v1400, %v570
        %v1402 = vadd.f32 %v1401, 0.0
        %s1403 = sld [smem:[#allocation3 + $0xd]]
        %v1404 = vstv %s1403
        %v1405 = vmul.f32 %v1404, %v570
        %1407 = vrot.lane.b32.xlu0 %v1405, 112
        %v1408 = vpop.permute.xlu0 %1407
        %v1409 = vrot.slane %v1408, 1
        %v1410 = vsel %vm577, %v1408, %v1409
        %v1412 = vadd.f32 %v1402, %v1410
        %s1413 = sld [smem:[#allocation3 + $0x14]]
        %v1414 = vstv %s1413
        %v1415 = vmul.f32 %v1414, %v570
        %1417 = vrot.lane.b32.xlu0 %v1415, 96
        %v1418 = vpop.permute.xlu0 %1417
        %v1419 = vrot.slane %v1418, 1
        %v1420 = vsel %vm588, %v1418, %v1419
        %v1422 = vadd.f32 %v1412, %v1420
        %s1423 = sld [smem:[#allocation3 + $0x1b]]
        %v1424 = vstv %s1423
        %v1425 = vmul.f32 %v1424, %v570
        %1427 = vrot.lane.b32.xlu0 %v1425, 80
        %v1428 = vpop.permute.xlu0 %1427
        %v1429 = vrot.slane %v1428, 1
        %v1430 = vsel %vm599, %v1428, %v1429
        %v1432 = vadd.f32 %v1422, %v1430
        %s1433 = sld [smem:[#allocation3 + $0x22]]
        %v1434 = vstv %s1433
        %v1435 = vmul.f32 %v1434, %v570
        %1437 = vrot.lane.b32.xlu0 %v1435, 64
        %v1438 = vpop.permute.xlu0 %1437
        %v1439 = vrot.slane %v1438, 1
        %v1440 = vsel %vm610, %v1438, %v1439
        %v1442 = vadd.f32 %v1432, %v1440
        %s1443 = sld [smem:[#allocation3 + $0x29]]
        %v1444 = vstv %s1443
        %v1445 = vmul.f32 %v1444, %v570
        %1447 = vrot.lane.b32.xlu0 %v1445, 48
        %v1448 = vpop.permute.xlu0 %1447
        %v1449 = vrot.slane %v1448, 1
        %v1450 = vsel %vm621, %v1448, %v1449
        %v1452 = vadd.f32 %v1442, %v1450
        %s1453 = sld [smem:[#allocation3 + $0x30]]
        %v1454 = vstv %s1453
        %v1455 = vmul.f32 %v1454, %v570
        %1457 = vrot.lane.b32.xlu0 %v1455, 32
        %v1458 = vpop.permute.xlu0 %1457
        %v1459 = vrot.slane %v1458, 1
        %v1460 = vsel %vm288, %v1458, %v1459
        %v1462 = vadd.f32 %v1452, %v1460
        %s1463 = sld [smem:[#allocation3 + $0x37]]
        %v1464 = vstv %s1463
        %v1465 = vmul.f32 %v1464, %v641
        %v1466 = vadd.f32 %v1462, %v1465
        %s1467 = sld [smem:[#allocation3 + $0x3e]]
        %v1468 = vstv %s1467
        %v1469 = vmul.f32 %v1468, %v641
        %1471 = vrot.lane.b32.xlu0 %v1469, 112
        %v1472 = vpop.permute.xlu0 %1471
        %v1473 = vrot.slane %v1472, 1
        %v1474 = vsel %vm577, %v1472, %v1473
        %v1476 = vadd.f32 %v1466, %v1474
        %s1477 = sld [smem:[#allocation3 + $0x45]]
        %v1478 = vstv %s1477
        %v1479 = vmul.f32 %v1478, %v641
        %1481 = vrot.lane.b32.xlu0 %v1479, 96
        %v1482 = vpop.permute.xlu0 %1481
        %v1483 = vrot.slane %v1482, 1
        %v1484 = vsel %vm588, %v1482, %v1483
        %v1486 = vadd.f32 %v1476, %v1484
        %s1487 = sld [smem:[#allocation3 + $0x4c]]
        %v1488 = vstv %s1487
        %v1489 = vmul.f32 %v1488, %v641
        %1491 = vrot.lane.b32.xlu0 %v1489, 80
        %v1492 = vpop.permute.xlu0 %1491
        %v1493 = vrot.slane %v1492, 1
        %v1494 = vsel %vm599, %v1492, %v1493
        %v1496 = vadd.f32 %v1486, %v1494
        %s1497 = sld [smem:[#allocation3 + $0x53]]
        %v1498 = vstv %s1497
        %v1499 = vmul.f32 %v1498, %v641
        %1501 = vrot.lane.b32.xlu0 %v1499, 64
        %v1502 = vpop.permute.xlu0 %1501
        %v1503 = vrot.slane %v1502, 1
        %v1504 = vsel %vm610, %v1502, %v1503
        %v1506 = vadd.f32 %v1496, %v1504
        %s1507 = sld [smem:[#allocation3 + $0x5a]]
        %v1508 = vstv %s1507
        %v1509 = vmul.f32 %v1508, %v641
        %1511 = vrot.lane.b32.xlu0 %v1509, 48
        %v1512 = vpop.permute.xlu0 %1511
        %v1513 = vrot.slane %v1512, 1
        %v1514 = vsel %vm621, %v1512, %v1513
        %v1516 = vadd.f32 %v1506, %v1514
        %s1517 = sld [smem:[#allocation3 + $0x61]]
        %v1518 = vstv %s1517
        %v1519 = vmul.f32 %v1518, %v641
        %1521 = vrot.lane.b32.xlu0 %v1519, 32
        %v1522 = vpop.permute.xlu0 %1521
        %v1523 = vrot.slane %v1522, 1
        %v1524 = vsel %vm288, %v1522, %v1523
        %v1526 = vadd.f32 %v1516, %v1524
        %s1527 = scalar_lea.vmem %s4, 6
        %v1528 = vld [vmem:[%s1527] ss:$8 sm:$0x3]
        %1530 = vrot.lane.b32.xlu0 %v1526, 122
        %v1531 = vpop.permute.xlu0 %1530
        %v1532 = vrot.slane %v1531, 1
        %vm1533 = vcmask 998400
        %v1534 = vsel %vm1533, %v1531, %v1532
        %v1536 = vmul.f32 %v1528, %v1534
        %v1537 = vadd.f32 %v1398, %v1536
        %v1538 = vxor.u32 %v1537, 2147483648
        %v1539 = vmul.f32 %v1538, 1.442695
        %v1540 = vpow.pop %v1539
        %v1541 = vadd.f32 %v1540, 1.0
        %v1542 = vrcp.pop %v1541
        %v1543 = vmul.f32 %v1541, %v1542
        %v1544 = vsub.f32 1.0, %v1543
        %v1545 = vmul.f32 %v1542, %v1544
        %v1546 = vadd.f32 %v1542, %v1545
        %vm1547 = vweird.f32 %v1541
        %vm1548 = vweird.f32 %v1542
        %vm1549 = vmor %vm1547, %vm1548
        %v1550 = vsel %vm1549, %v1542, %v1546
        %v1551 = vand.u32 2147483647, %v1541
        %vm1552 = vcmp.eq.f32.partialorder %v1551, 8.507059e+37
        %v1553 = vand.u32 %v1541, 2147483648
        %v1554 = vor.u32 1.1754944e-38, %v1553
        %v1555 = vsel %vm1552, %v1554, %v1550
        %v1556 = vmul.f32 1.0, %v1555
        %v1558 = vperm.slane %v1556, 0
        %v1559 = vperm.slane %v1556, 1
        %v1562 = vmul.f32 %v479, %v1558
        %v1563 = vmul.f32 %v480, %v1559
        %v1564 = vmul.f32 %v481, %v1558
        %v1565 = vmul.f32 %v482, %v1559
        %v1566 = vmul.f32 %v483, %v1558
        %v1567 = vmul.f32 %v484, %v1559
        %v1568 = vmul.f32 %v485, %v1558
        %v1569 = vmul.f32 %v486, %v1559
        %1570 = vst [vmem:[%s238] sm:$0xff] %v1562
        %1571 = vst [vmem:[%s238 + $0x8] sm:$0xff] %v1563
        %1572 = vst [vmem:[%s238 + $0x10] sm:$0xff] %v1564
        %1573 = vst [vmem:[%s238 + $0x18] sm:$0xff] %v1565
        %1574 = vst [vmem:[%s238 + $0x20] sm:$0xff] %v1566
        %1575 = vst [vmem:[%s238 + $0x28] sm:$0xff] %v1567
        %1576 = vst [vmem:[%s238 + $0x30] sm:$0xff] %v1568
        %1577 = vst [vmem:[%s238 + $0x38] sm:$0xff] %v1569
        %p1578 = scmp.lt.s32.totalorder %s17, 1
        %s1579 = scalar_select %p1578, %s17, 1
        %s1580 = smul.addr %s1579, 8
        %s1581 = smul.addr %s1580, 8
        %s1582 = scalar_lea.vmem %s5, %s1581
        // Predicated region
        $region45: #{cbam_forward.1} parent=39 // pred_check
          %p1583 = pneg %p145
        $region46: #{cbam_forward.1} parent=39 // pred_check_branch
          %1585 = sbr.rel (%p1583) target = $region48
        $region47: #{cbam_forward.1} parent=39 // pred_region
          _
        $region48: #{cbam_forward.1} parent=39 // pred_fallthru
          _
      $region40: #{cbam_forward.1} parent=5 // pred_fallthru
        _
      %p1586 = scmp.le.s32.totalorder 2, %s12
      // Predicated region
      $region49: #{cbam_forward.1} parent=5 // pred_check
        %p1587 = pneg %p1586
      $region50: #{cbam_forward.1} parent=5 // pred_check_branch
        %1589 = sbr.rel (%p1587) target = $region52
      $region51: #{cbam_forward.1} parent=5 // pred_region
        %s1590 = ssub.s32 %s12, 2
        // Predicated region
        $region53: #{cbam_forward.1} parent=51 // pred_check
          %p1591 = pneg %p151
        $region54: #{cbam_forward.1} parent=51 // pred_check_branch
          %1593 = sbr.rel (%p1591) target = $region56
        $region55: #{cbam_forward.1} parent=51 // pred_region
          %p1594 = scmp.lt.s32.totalorder %s18, 1
          %s1595 = scalar_select %p1594, %s18, 1
          %s1596 = smul.addr %s1595, 8
          %s1597 = smul.addr %s1596, 8
          %s1598 = scalar_lea.vmem %s5, %s1597
        $region56: #{cbam_forward.1} parent=51 // pred_fallthru
          _
      $region52: #{cbam_forward.1} parent=5 // pred_fallthru
        _
    $region6: #{cbam_forward.1} parent=1 // loop_footer
      %s16 = sadd.s32 1, %s12
    $region7: #{cbam_forward.1} parent=1 // loop_footer_branch
      %11 = sbr.rel target = $region3
    $region8: #{cbam_forward.1} parent=1 // loop_exit
      _
    %1599 = vsyncpa [#allocation4], 1
    %s1600 = scalar_lea.sflag [#allocation4], 1
    %1601 = vsyncpa %s1600, 1

</llo_original>
